<compile_context>
chip_gen: v7x
topology: tpu7x:2x2x1
jax: 0.10.0
libtpu: 0.0.40
codegen_flags: <defaults>
</compile_context>

<pallas_src>
import jax
import jax.numpy as jnp
from jax.experimental import pallas as pl
from jax.experimental.pallas import tpu as pltpu

EPS = 1e-5  # nn.LayerNorm default


def _round_up(a, b):
    return ((a + b - 1) // b) * b


def prenorm_kernel(x_ref, gamma_ref, beta_ref, w_ref, bias_ref, o_ref, y_ref):
    # x_ref:      (tile_rows, D)          input rows
    # gamma/beta: (1, D)                  LayerNorm affine params (f32)
    # w_ref:      (D, tile_cols)          bf16 weight column tile
    # bias_ref:   (1, tile_cols)          f32 bias column tile
    # o_ref:      (tile_rows, tile_cols)  output tile
    # y_ref:      (tile_rows, D) bf16 VMEM scratch holding LN(x) for this row tile
    j = pl.program_id(1)

    # LayerNorm once per row tile (at column tile 0); reused for all col tiles.
    @pl.when(j == 0)
    def _():
        x = x_ref[...].astype(jnp.float32)
        mean = jnp.mean(x, axis=-1, keepdims=True)
        centered = x - mean
        var = jnp.mean(centered * centered, axis=-1, keepdims=True)
        xn = centered * jax.lax.rsqrt(var + EPS)
        y = xn * gamma_ref[...].astype(jnp.float32) + beta_ref[...].astype(jnp.float32)
        y_ref[...] = y.astype(jnp.bfloat16)

    # fn := Linear(dim, dim): bf16 operands on the MXU, f32 accumulation.
    out = jnp.dot(y_ref[...], w_ref[...], preferred_element_type=jnp.float32)
    out = out + bias_ref[...].astype(jnp.float32)
    o_ref[...] = out.astype(o_ref.dtype)


def prenorm(x, gamma, beta, w, bias, *, tile_rows=256, tile_cols=None,
            vmem_budget=40 * 1024 * 1024):
    B, S, D = x.shape
    N = B * S
    xb = jnp.dtype(x.dtype).itemsize

    # Row tiling: shrink tile to the problem if it is small, pad N otherwise.
    tr = min(tile_rows, _round_up(N, 8))
    n_pad = _round_up(N, tr)

    def working_set(tc):
        return (
            2 * tr * D * xb                 # x tiles (double-buffered)
            + 2 * tr * tc * xb              # out tiles
            + 2 * D * tc * 2                # W (bf16) tiles
            + 2 * (2 * D + tc) * 4          # gamma, beta, bias
            + tr * D * 2                    # bf16 LN scratch
        )

    if tile_cols is None:
        # Prefer full-width output tiles: W's block index is then constant, so
        # the weight matrix is fetched from HBM once per core for the whole
        # kernel instead of once per row tile.  Fall back to lane-dense
        # (multiple-of-128) column tiles when that would blow the VMEM budget.
        candidates = [D] + [c for c in (2048, 1024, 512, 256, 128)
                            if c < D and D % c == 0]
        tile_cols = candidates[-1]
        for tc in candidates:
            if working_set(tc) <= vmem_budget:
                tile_cols = tc
                break

    xf = x.reshape(N, D)
    if n_pad != N:
        xf = jnp.pad(xf, ((0, n_pad - N), (0, 0)))

    w_bf16 = w.astype(jnp.bfloat16)

    # Scoped-VMEM limit: actual working set + ~30% headroom, floor 32 MiB,
    # capped at 64 MiB (v7x physical VMEM per TensorCore).
    vmem_limit = min(max(int(working_set(tile_cols) * 1.3), 32 * 1024 * 1024),
                     64 * 1024 * 1024)

    grid = (n_pad // tr, D // tile_cols)

    out = pl.pallas_call(
        prenorm_kernel,
        out_shape=jax.ShapeDtypeStruct((n_pad, D), x.dtype),
        grid_spec=pltpu.PrefetchScalarGridSpec(
            num_scalar_prefetch=0,
            grid=grid,
            in_specs=[
                pl.BlockSpec((tr, D), lambda i, j: (i, 0)),          # x rows
                pl.BlockSpec((1, D), lambda i, j: (0, 0)),           # gamma
                pl.BlockSpec((1, D), lambda i, j: (0, 0)),           # beta
                pl.BlockSpec((D, tile_cols), lambda i, j: (0, j)),   # W col tile
                pl.BlockSpec((1, tile_cols), lambda i, j: (0, j)),   # bias col tile
            ],
            out_specs=pl.BlockSpec((tr, tile_cols), lambda i, j: (i, j)),
            scratch_shapes=[pltpu.VMEM((tr, D), jnp.bfloat16)],
        ),
        compiler_params=pltpu.CompilerParams(
            dimension_semantics=("parallel", "arbitrary"),
            vmem_limit_bytes=vmem_limit,
        ),
    )(xf, gamma, beta, w_bf16, bias)

    return out[:N].reshape(B, S, D)


def prenorm_ref(x, gamma, beta, w, bias):
    # Reference with the same mixed-precision recipe as the kernel:
    # f32 LayerNorm statistics, bf16 GEMM operands, f32 accumulation.
    xf = x.astype(jnp.float32)
    mean = jnp.mean(xf, axis=-1, keepdims=True)
    var = jnp.mean((xf - mean) ** 2, axis=-1, keepdims=True)
    xn = (xf - mean) * jax.lax.rsqrt(var + EPS)
    y = (xn * gamma + beta).astype(jnp.bfloat16)
    out = jnp.dot(y, w.astype(jnp.bfloat16), preferred_element_type=jnp.float32)
    return (out + bias).astype(x.dtype)


if __name__ == "__main__":
    # Small but lane-dense shapes; N=400 exercises row padding (-> 512) and
    # multi-row-tile grids; D=384 exercises both the resident-W path (default)
    # and the column-tiled path (forced tile_cols=128 below).
    B, S, D = 2, 200, 384
    key = jax.random.PRNGKey(0)
    kx, kw, kb, kg, kbt = jax.random.split(key, 5)

    x = jax.random.normal(kx, (B, S, D), dtype=jnp.float32)

    # LayerNorm affine params (arbitrary learned values; PyTorch init would be 1/0).
    gamma = (1.0 + 0.1 * jax.random.normal(kg, (1, D))).astype(jnp.float32)
    beta = (0.05 * jax.random.normal(kbt, (1, D))).astype(jnp.float32)

    # Deterministic params for the wrapped fn (Linear(D, D)).
    w = jax.random.normal(kw, (D, D), dtype=jnp.float32) * (1.0 / jnp.sqrt(D))
    bias = jax.random.normal(kb, (1, D), dtype=jnp.float32) * 0.01

    ref = prenorm_ref(x, gamma, beta, w, bias)

    # Default path: full-width W tile (W DMA'd once per core).
    out = jax.block_until_ready(prenorm(x, gamma, beta, w, bias))
    assert out.shape == (B, S, D)
    assert jnp.allclose(out, ref, atol=2e-2, rtol=2e-2), float(jnp.max(jnp.abs(out - ref)))

    # Column-tiled path (used when dim is too large for a resident W).
    out_t = jax.block_until_ready(prenorm(x, gamma, beta, w, bias, tile_cols=128))
    assert jnp.allclose(out_t, ref, atol=2e-2, rtol=2e-2), float(jnp.max(jnp.abs(out_t - ref)))

    print("KERNEL_OK")
</pallas_src>

<mosaic_0001>
module attributes {stable_mosaic.version = 11 : i64} {
  func.func @prenorm_kernel(%arg0: i32, %arg1: i32, %arg2: memref<256x384xf32, #tpu.memory_space<vmem>>, %arg3: memref<1x384xf32, #tpu.memory_space<vmem>>, %arg4: memref<1x384xf32, #tpu.memory_space<vmem>>, %arg5: memref<384x384xbf16, #tpu.memory_space<vmem>>, %arg6: memref<1x384xf32, #tpu.memory_space<vmem>>, %arg7: memref<256x384xf32, #tpu.memory_space<vmem>>, %arg8: memref<256x384xbf16, #tpu.memory_space<vmem>>) attributes {dimension_semantics = [#tpu.dimension_semantics<parallel>, #tpu.dimension_semantics<arbitrary>], iteration_bounds = array<i64: 2, 1>, scalar_prefetch = 0 : i64, scratch_operands = 1 : i64, tpu.core_type = #tpu.core_type<tc>, window_params = [{transform_indices = @transform_0, window_bounds = array<i64: 256, 384>}, {pipeline_mode = #tpu.pipeline_mode<synchronous>, transform_indices = @transform_1, window_bounds = array<i64: 1, 384>}, {pipeline_mode = #tpu.pipeline_mode<synchronous>, transform_indices = @transform_2, window_bounds = array<i64: 1, 384>}, {transform_indices = @transform_3, window_bounds = array<i64: 384, 384>}, {transform_indices = @transform_4, window_bounds = array<i64: 1, 384>}, {transform_indices = @transform_5, window_bounds = array<i64: 256, 384>}]} {
    %c0_i32 = arith.constant 0 : i32
    %0 = arith.cmpi eq, %arg1, %c0_i32 : i32
    %1 = arith.extui %0 : i1 to i32
    %c0_i32_0 = arith.constant 0 : i32
    %2 = arith.cmpi ne, %1, %c0_i32_0 : i32
    scf.if %2 {
      %c0_8 = arith.constant 0 : index
      %c0_9 = arith.constant 0 : index
      %10 = vector.load %arg2[%c0_8, %c0_9] : memref<256x384xf32, #tpu.memory_space<vmem>>, vector<256x384xf32>
      %cst_10 = arith.constant dense<0.000000e+00> : vector<256xf32>
      %11 = vector.multi_reduction <add>, %10, %cst_10 [1] : vector<256x384xf32> to vector<256xf32>
      %12 = vector.shape_cast %11 : vector<256xf32> to vector<256x1xf32>
      %cst_11 = arith.constant 3.840000e+02 : f32
      %13 = vector.broadcast %cst_11 : f32 to vector<256x1xf32>
      %14 = arith.divf %12, %13 : vector<256x1xf32>
      %15 = vector.broadcast %14 : vector<256x1xf32> to vector<256x384xf32>
      %16 = arith.subf %10, %15 : vector<256x384xf32>
      %17 = arith.mulf %16, %16 : vector<256x384xf32>
      %cst_12 = arith.constant dense<0.000000e+00> : vector<256xf32>
      %18 = vector.multi_reduction <add>, %17, %cst_12 [1] : vector<256x384xf32> to vector<256xf32>
      %19 = vector.shape_cast %18 : vector<256xf32> to vector<256x1xf32>
      %cst_13 = arith.constant 3.840000e+02 : f32
      %20 = vector.broadcast %cst_13 : f32 to vector<256x1xf32>
      %21 = arith.divf %19, %20 : vector<256x1xf32>
      %cst_14 = arith.constant 9.99999974E-6 : f32
      %22 = vector.broadcast %cst_14 : f32 to vector<256x1xf32>
      %23 = arith.addf %21, %22 : vector<256x1xf32>
      %24 = math.rsqrt %23 : vector<256x1xf32>
      %25 = vector.broadcast %24 : vector<256x1xf32> to vector<256x384xf32>
      %26 = arith.mulf %16, %25 : vector<256x384xf32>
      %c0_15 = arith.constant 0 : index
      %c0_16 = arith.constant 0 : index
      %27 = vector.load %arg3[%c0_15, %c0_16] : memref<1x384xf32, #tpu.memory_space<vmem>>, vector<1x384xf32>
      %28 = vector.broadcast %27 : vector<1x384xf32> to vector<256x384xf32>
      %29 = arith.mulf %26, %28 : vector<256x384xf32>
      %c0_17 = arith.constant 0 : index
      %c0_18 = arith.constant 0 : index
      %30 = vector.load %arg4[%c0_17, %c0_18] : memref<1x384xf32, #tpu.memory_space<vmem>>, vector<1x384xf32>
      %31 = vector.broadcast %30 : vector<1x384xf32> to vector<256x384xf32>
      %32 = arith.addf %29, %31 : vector<256x384xf32>
      %33 = arith.truncf %32 : vector<256x384xf32> to vector<256x384xbf16>
      %c0_19 = arith.constant 0 : index
      %c0_20 = arith.constant 0 : index
      %34 = vector.load %arg8[%c0_19, %c0_20] : memref<256x384xbf16, #tpu.memory_space<vmem>>, vector<256x384xbf16>
      tpu.vector_store %arg8[%c0_19, %c0_20], %33 {strides = array<i32>} : memref<256x384xbf16, #tpu.memory_space<vmem>>, vector<256x384xbf16>,
    } else {
    }
    %c0 = arith.constant 0 : index
    %c0_1 = arith.constant 0 : index
    %3 = vector.load %arg8[%c0, %c0_1] : memref<256x384xbf16, #tpu.memory_space<vmem>>, vector<256x384xbf16>
    %c0_2 = arith.constant 0 : index
    %c0_3 = arith.constant 0 : index
    %4 = vector.load %arg5[%c0_2, %c0_3] : memref<384x384xbf16, #tpu.memory_space<vmem>>, vector<384x384xbf16>
    %cst = arith.constant dense<0.000000e+00> : vector<256x384xf32>
    %5 = tpu.matmul %3, %4, %cst {dimension_numbers = #tpu.dot_dimension_numbers<[1], [0], [0], [1], [0, 0, 1, 1], [], []>} : vector<256x384xbf16>, vector<384x384xbf16>, vector<256x384xf32> -> vector<256x384xf32>
    %c0_4 = arith.constant 0 : index
    %c0_5 = arith.constant 0 : index
    %6 = vector.load %arg6[%c0_4, %c0_5] : memref<1x384xf32, #tpu.memory_space<vmem>>, vector<1x384xf32>
    %7 = vector.broadcast %6 : vector<1x384xf32> to vector<256x384xf32>
    %8 = arith.addf %5, %7 : vector<256x384xf32>
    %c0_6 = arith.constant 0 : index
    %c0_7 = arith.constant 0 : index
    %9 = vector.load %arg7[%c0_6, %c0_7] : memref<256x384xf32, #tpu.memory_space<vmem>>, vector<256x384xf32>
    tpu.vector_store %arg7[%c0_6, %c0_7], %8 {strides = array<i32>} : memref<256x384xf32, #tpu.memory_space<vmem>>, vector<256x384xf32>,
    return
  }
  func.func @transform_0(%arg0: i32, %arg1: i32) -> (i32, i32) {
    %c0_i32 = arith.constant 0 : i32
    %c0_i32_0 = arith.constant 0 : i32
    return %arg0, %c0_i32 : i32, i32
  }
  func.func @transform_1(%arg0: i32, %arg1: i32) -> (i32, i32) {
    %c0_i32 = arith.constant 0 : i32
    %c0_i32_0 = arith.constant 0 : i32
    %c0_i32_1 = arith.constant 0 : i32
    return %c0_i32, %c0_i32_0 : i32, i32
  }
  func.func @transform_2(%arg0: i32, %arg1: i32) -> (i32, i32) {
    %c0_i32 = arith.constant 0 : i32
    %c0_i32_0 = arith.constant 0 : i32
    %c0_i32_1 = arith.constant 0 : i32
    return %c0_i32, %c0_i32_0 : i32, i32
  }
  func.func @transform_3(%arg0: i32, %arg1: i32) -> (i32, i32) {
    %c0_i32 = arith.constant 0 : i32
    %c0_i32_0 = arith.constant 0 : i32
    return %c0_i32, %arg1 : i32, i32
  }
  func.func @transform_4(%arg0: i32, %arg1: i32) -> (i32, i32) {
    %c0_i32 = arith.constant 0 : i32
    %c0_i32_0 = arith.constant 0 : i32
    return %c0_i32, %arg1 : i32, i32
  }
  func.func @transform_5(%arg0: i32, %arg1: i32) -> (i32, i32) {
    %c0_i32 = arith.constant 0 : i32
    return %arg0, %arg1 : i32, i32
  }
}

</mosaic_0001>

<llo_original>
// kernel: tpu_custom_call.1
$region0: #{tpu_custom_call.1}
  #allocation0 [shape = 'u32[]', space=smem, size = 0x4, offset = 0x4, fixed_abs, tag = 'smem constant byte address 0x4 - core index']
  #allocation1 [shape = 'u32[144,128]{1,0:T(1,128)}', space=vmem, size = 0x12000, scoped, tag = 'internal scratch']
  #allocation2 [shape = 'bf16[256,384]{1,0:T(16,128)(2,1)}', space=vmem, size = 0x30000, scoped, tag = 'scratch operand']
  %s0 = inlined_call_operand.hbm [shape: f32[512,384], index: 0, kind: input, shape index: {}]
  %s1 = inlined_call_operand.vmem [shape: f32[1,384], index: 1, kind: input, shape index: {}]
  %s2 = inlined_call_operand.vmem [shape: f32[1,384], index: 2, kind: input, shape index: {}]
  %s3 = inlined_call_operand.hbm [shape: bf16[384,384], index: 3, kind: input, shape index: {}]
  %s4 = inlined_call_operand.vmem [shape: f32[1,384], index: 4, kind: input, shape index: {}]
  %s5 = inlined_call_operand.hbm [shape: f32[512,384], index: 5, kind: output, shape index: {}]
  %s6 = sld [smem:[#allocation0]]
  $region65: #{tpu_custom_call.1} parent=0
    _
  %s8 = ssub.s32 1, %s6
  %s9 = scalar_select 0, %s8, %s6
  $region1: #{tpu_custom_call.1} parent=0
    #allocation3 [shape = 'u8[786432]{0}', space=vmem, size = 0xc0000, scoped, tag = 'input window, operand 0']
    #allocation4 [shape = 's32[2]{0}', space=sflag, size = 0x8, scoped, tag = 'scoped memory for tpu_custom_call.1']
    #allocation5 [shape = 's32[2]{0}', space=sflag, size = 0x8, scoped, tag = 'scoped memory for tpu_custom_call.1']
    #allocation6 [shape = 'u8[294912]{0}', space=vmem, size = 0x48000, scoped, tag = 'input window, operand 3, single buffered']
    #allocation7 [shape = 's32[1]{0}', space=sflag, size = 0x4, scoped, tag = 'scoped memory for tpu_custom_call.1']
    #allocation8 [shape = 'u8[786432]{0}', space=vmem, size = 0xc0000, scoped, tag = 'output window, operand 0']
    %10 = vsyncpa [#allocation4], 0
    %s11 = scalar_lea.sflag [#allocation4], 1
    %12 = vsyncpa %s11, 0
    %13 = vsyncpa [#allocation7], 0
    %14 = vsyncpa [#allocation5], 0
    %s15 = scalar_lea.sflag [#allocation5], 1
    %16 = vsyncpa %s15, 0
    loop: start=0, step=1, limit=4
    $region2: #{tpu_custom_call.1} parent=1 // loop_pre_header
      _
    $region3: #{tpu_custom_call.1} parent=1 // loop_header
      %s18 = sphi 0, %s22
      %p19 = scmp.ge.s32.totalorder %s18, 4
      %s25 = sphi 0, %s37
      %s26 = sphi 0, %s33
      %s27 = sphi 0, %s25
      %s28 = sphi 0, %s26
      %s29 = sphi 0, %s27
      %s30 = sphi 0, %s28
      %s40 = sphi 0, %s42
      %s43 = sphi 0, %s40
      %s44 = sphi 0, %s43
      %s60 = sphi 0, %s44
      %s64 = sphi 0, %s64
      %s66 = sphi 0, %s64
      %s67 = sphi 0, %s66
      %s81 = sphi 0, %s67
      %s85 = sphi 0, %s85
      %s87 = sphi 0, %s85
      %s88 = sphi 0, %s87
      %s102 = sphi 0, %s88
      %s108 = sphi 0, %s110
      %s111 = sphi 0, %s108
      %s112 = sphi 0, %s111
      %s128 = sphi 0, %s112
      %s134 = sphi 0, %s136
      %s137 = sphi 0, %s134
      %s138 = sphi 0, %s137
      %s154 = sphi 0, %s138
      %s162 = sphi 0, %s164
      %s165 = sphi 0, %s162
      %s166 = sphi 0, %s165
      %s182 = sphi 0, %s166
    $region4: #{tpu_custom_call.1} parent=1 // loop_header_branch
      %21 = sbr.rel (%p19) target = $region8
    $region5: #{tpu_custom_call.1} parent=1 // loop_body
      %s23 = ssub.s32 %s18, 1
      %s24 = ssub.s32 %s18, 2
      %s31 = sadd.s32 1, %s26
      %p32 = scmp.ge.s32.totalorder %s31, 1
      %s33 = scalar_select %p32, 0, %s31
      %s34 = sadd.s32 1, %s25
      %s35 = scalar_select %p32, %s34, %s25
      %p36 = scmp.ge.s32.totalorder %s35, 2
      %s37 = scalar_select %p36, 0, %s35
      %s38 = ssub.s32 %s25, %s37
      %p39 = scmp.eq.s32.totalorder %s38, 0
      %s41 = sadd.s32 %s40, 1
      %s42 = scalar_select %p39, %s40, %s41
      %p45 = pneg %p39
      %p46 = scmp.eq.s32.totalorder %s18, 1
      %p47 = por %p45, %p46
      %p48 = scmp.ne.s32.totalorder %s40, %s43
      %p49 = scmp.eq.s32.totalorder %s18, 0
      %p50 = por %p48, %p49
      %p51 = scmp.ne.s32.totalorder %s40, %s43
      %p52 = scmp.eq.s32.totalorder %s23, 1
      %p53 = por %p51, %p52
      %p54 = scmp.ne.s32.totalorder %s43, %s44
      %p55 = scmp.eq.s32.totalorder %s23, 0
      %p56 = por %p54, %p55
      %p57 = scmp.ne.s32.totalorder %s43, %s44
      %p58 = scmp.eq.s32.totalorder %s24, 1
      %p59 = por %p57, %p58
      %p61 = scmp.ne.s32.totalorder %s44, %s60
      %p62 = scmp.eq.s32.totalorder %s24, 0
      %p63 = por %p61, %p62
      %s65 = sadd.s32 %s64, 1
      %p68 = scmp.eq.s32.totalorder %s18, 1
      %p69 = scmp.ne.s32.totalorder %s64, %s66
      %p70 = scmp.eq.s32.totalorder %s18, 0
      %p71 = por %p69, %p70
      %p72 = scmp.ne.s32.totalorder %s64, %s66
      %p73 = scmp.eq.s32.totalorder %s23, 1
      %p74 = por %p72, %p73
      %p75 = scmp.ne.s32.totalorder %s66, %s67
      %p76 = scmp.eq.s32.totalorder %s23, 0
      %p77 = por %p75, %p76
      %p78 = scmp.ne.s32.totalorder %s66, %s67
      %p79 = scmp.eq.s32.totalorder %s24, 1
      %p80 = por %p78, %p79
      %p82 = scmp.ne.s32.totalorder %s67, %s81
      %p83 = scmp.eq.s32.totalorder %s24, 0
      %p84 = por %p82, %p83
      %s86 = sadd.s32 %s85, 1
      %p89 = scmp.eq.s32.totalorder %s18, 1
      %p90 = scmp.ne.s32.totalorder %s85, %s87
      %p91 = scmp.eq.s32.totalorder %s18, 0
      %p92 = por %p90, %p91
      %p93 = scmp.ne.s32.totalorder %s85, %s87
      %p94 = scmp.eq.s32.totalorder %s23, 1
      %p95 = por %p93, %p94
      %p96 = scmp.ne.s32.totalorder %s87, %s88
      %p97 = scmp.eq.s32.totalorder %s23, 0
      %p98 = por %p96, %p97
      %p99 = scmp.ne.s32.totalorder %s87, %s88
      %p100 = scmp.eq.s32.totalorder %s24, 1
      %p101 = por %p99, %p100
      %p103 = scmp.ne.s32.totalorder %s88, %s102
      %p104 = scmp.eq.s32.totalorder %s24, 0
      %p105 = por %p103, %p104
      %s106 = ssub.s32 %s26, %s33
      %p107 = scmp.eq.s32.totalorder %s106, 0
      %s109 = sadd.s32 %s108, 1
      %s110 = scalar_select %p107, %s108, %s109
      %p113 = pneg %p107
      %p114 = scmp.eq.s32.totalorder %s18, 1
      %p115 = por %p113, %p114
      %p116 = scmp.ne.s32.totalorder %s108, %s111
      %p117 = scmp.eq.s32.totalorder %s18, 0
      %p118 = por %p116, %p117
      %p119 = scmp.ne.s32.totalorder %s108, %s111
      %p120 = scmp.eq.s32.totalorder %s23, 1
      %p121 = por %p119, %p120
      %p122 = scmp.ne.s32.totalorder %s111, %s112
      %p123 = scmp.eq.s32.totalorder %s23, 0
      %p124 = por %p122, %p123
      %p125 = scmp.ne.s32.totalorder %s111, %s112
      %p126 = scmp.eq.s32.totalorder %s24, 1
      %p127 = por %p125, %p126
      %p129 = scmp.ne.s32.totalorder %s112, %s128
      %p130 = scmp.eq.s32.totalorder %s24, 0
      %p131 = por %p129, %p130
      %s132 = ssub.s32 %s26, %s33
      %p133 = scmp.eq.s32.totalorder %s132, 0
      %s135 = sadd.s32 %s134, 1
      %s136 = scalar_select %p133, %s134, %s135
      %p139 = pneg %p133
      %p140 = scmp.eq.s32.totalorder %s18, 1
      %p141 = por %p139, %p140
      %p142 = scmp.ne.s32.totalorder %s134, %s137
      %p143 = scmp.eq.s32.totalorder %s18, 0
      %p144 = por %p142, %p143
      %p145 = scmp.ne.s32.totalorder %s134, %s137
      %p146 = scmp.eq.s32.totalorder %s23, 1
      %p147 = por %p145, %p146
      %p148 = scmp.ne.s32.totalorder %s137, %s138
      %p149 = scmp.eq.s32.totalorder %s23, 0
      %p150 = por %p148, %p149
      %p151 = scmp.ne.s32.totalorder %s137, %s138
      %p152 = scmp.eq.s32.totalorder %s24, 1
      %p153 = por %p151, %p152
      %p155 = scmp.ne.s32.totalorder %s138, %s154
      %p156 = scmp.eq.s32.totalorder %s24, 0
      %p157 = por %p155, %p156
      %s158 = ssub.s32 %s25, %s37
      %s159 = ssub.s32 %s26, %s33
      %s160 = sor.u32 %s158, %s159
      %p161 = scmp.eq.s32.totalorder %s160, 0
      %s163 = sadd.s32 %s162, 1
      %s164 = scalar_select %p161, %s162, %s163
      %p167 = pneg %p161
      %p168 = scmp.eq.s32.totalorder %s18, 1
      %p169 = por %p167, %p168
      %p170 = scmp.ne.s32.totalorder %s162, %s165
      %p171 = scmp.eq.s32.totalorder %s18, 0
      %p172 = por %p170, %p171
      %p173 = scmp.ne.s32.totalorder %s162, %s165
      %p174 = scmp.eq.s32.totalorder %s23, 1
      %p175 = por %p173, %p174
      %p176 = scmp.ne.s32.totalorder %s165, %s166
      %p177 = scmp.eq.s32.totalorder %s23, 0
      %p178 = por %p176, %p177
      %p179 = scmp.ne.s32.totalorder %s165, %s166
      %p180 = scmp.eq.s32.totalorder %s24, 1
      %p181 = por %p179, %p180
      %p183 = scmp.ne.s32.totalorder %s166, %s182
      %p184 = scmp.eq.s32.totalorder %s24, 0
      %p185 = por %p183, %p184
      %p186 = scmp.le.s32.totalorder 1, %s18
      %p187 = scmp.lt.s32.totalorder %s18, 3
      %p188 = pnand %p186, %p187
      %p189 = pneg %p188
      // Predicated region
      $region9: #{tpu_custom_call.1} parent=5 // pred_check
        _
      $region10: #{tpu_custom_call.1} parent=5 // pred_check_branch
        %191 = sbr.rel (%p188) target = $region12
      $region11: #{tpu_custom_call.1} parent=5 // pred_region
        %s192 = ssub.s32 %s18, 1
        // Predicated region
        $region13: #{tpu_custom_call.1} parent=11 // pred_check
          %p193 = pneg %p77
        $region14: #{tpu_custom_call.1} parent=11 // pred_check_branch
          %195 = sbr.rel (%p193) target = $region16
        $region15: #{tpu_custom_call.1} parent=11 // pred_region
          _
        $region16: #{tpu_custom_call.1} parent=11 // pred_fallthru
          _
        // Predicated region
        $region17: #{tpu_custom_call.1} parent=11 // pred_check
          %p196 = pneg %p98
        $region18: #{tpu_custom_call.1} parent=11 // pred_check_branch
          %198 = sbr.rel (%p196) target = $region20
        $region19: #{tpu_custom_call.1} parent=11 // pred_region
          _
        $region20: #{tpu_custom_call.1} parent=11 // pred_fallthru
          _
        // Predicated region
        $region21: #{tpu_custom_call.1} parent=11 // pred_check
          %p199 = pneg %p124
        $region22: #{tpu_custom_call.1} parent=11 // pred_check_branch
          %201 = sbr.rel (%p199) target = $region24
        $region23: #{tpu_custom_call.1} parent=11 // pred_region
          %s202 = smul.u32 3, %s28
          %s204 = ssub.s32 9216, 9216
          %205 = vsyncadd [#allocation7], %s204
          %s206 = smul.addr %s202, 64
          %s207 = scalar_lea.hbm %s3, %s206
          %s208 = sshll.u32 [#allocation6], 4
          %s209 = int_to_ptr.vmem [resolvable:$true] %s208
          %214 = dma.hbm_to_vmem [thread:$0]  %s207, 9216, %s209, [#allocation7], 192, 192, 12
        $region24: #{tpu_custom_call.1} parent=11 // pred_fallthru
          _
        // Predicated region
        $region25: #{tpu_custom_call.1} parent=11 // pred_check
          %p215 = pneg %p150
        $region26: #{tpu_custom_call.1} parent=11 // pred_check_branch
          %217 = sbr.rel (%p215) target = $region28
        $region27: #{tpu_custom_call.1} parent=11 // pred_region
          %s218 = smul.u32 3, %s28
          %p219 = scmp.lt.s32.totalorder %s218, 2
          %s220 = scalar_select %p219, %s218, 2
          %s221 = scalar_lea.vmem %s4, %s220
          %s222 = smul.u32 3, %s28
        $region28: #{tpu_custom_call.1} parent=11 // pred_fallthru
          _
      $region12: #{tpu_custom_call.1} parent=5 // pred_fallthru
        _
      %p223 = scmp.lt.s32.totalorder %s18, 2
      // Predicated region
      $region29: #{tpu_custom_call.1} parent=5 // pred_check
        %p224 = pneg %p223
      $region30: #{tpu_custom_call.1} parent=5 // pred_check_branch
        %226 = sbr.rel (%p224) target = $region32
      $region31: #{tpu_custom_call.1} parent=5 // pred_region
        // Predicated region
        $region33: #{tpu_custom_call.1} parent=31 // pred_check
          %p227 = pneg %p50
        $region34: #{tpu_custom_call.1} parent=31 // pred_check_branch
          %229 = sbr.rel (%p227) target = $region36
        $region35: #{tpu_custom_call.1} parent=31 // pred_region
          %s230 = sand.u32 %s40, 1
          %s231 = scalar_lea.sflag [#allocation4], %s230
          %s232 = sand.u32 %s40, 1
          %s233 = smul.addr %s232, 768
          %s234 = scalar_lea.vmem [#allocation3], %s233
          %s235 = smul.u32 32, %s25
          %s237 = ssub.s32 12288, 12288
          %238 = vsyncadd %s231, %s237
          %s239 = smul.addr %s235, 3
          %s240 = smul.addr %s239, 128
          %s241 = scalar_lea.hbm %s0, %s240
          %s242 = sshll.u32 %s234, 4
          %s243 = int_to_ptr.vmem [resolvable:$true] %s242
          %248 = dma.hbm_to_vmem [thread:$0]  %s241, 12288, %s243, %s231, 384, 384, 24
        $region36: #{tpu_custom_call.1} parent=31 // pred_fallthru
          _
      $region32: #{tpu_custom_call.1} parent=5 // pred_fallthru
        _
      %p249 = scmp.le.s32.totalorder 1, %s18
      %p250 = scmp.lt.s32.totalorder %s18, 3
      %p251 = pnand %p249, %p250
      %p252 = pneg %p251
      // Predicated region
      $region37: #{tpu_custom_call.1} parent=5 // pred_check
        _
      $region38: #{tpu_custom_call.1} parent=5 // pred_check_branch
        %254 = sbr.rel (%p251) target = $region40
      $region39: #{tpu_custom_call.1} parent=5 // pred_region
        %s255 = ssub.s32 %s18, 1
        %s256 = sand.u32 %s43, 1
        %s257 = scalar_lea.sflag [#allocation4], %s256
        %s258 = sand.u32 %s43, 1
        %s259 = smul.addr %s258, 768
        %s260 = scalar_lea.vmem [#allocation3], %s259
        // Predicated region
        $region41: #{tpu_custom_call.1} parent=39 // pred_check
          %p261 = pneg %p56
        $region42: #{tpu_custom_call.1} parent=39 // pred_check_branch
          %263 = sbr.rel (%p261) target = $region44
        $region43: #{tpu_custom_call.1} parent=39 // pred_region
          %264 = dma.done %s257, 12288
        $region44: #{tpu_custom_call.1} parent=39 // pred_fallthru
          _
        // Predicated region
        $region45: #{tpu_custom_call.1} parent=39 // pred_check
          %p265 = pneg %p124
        $region46: #{tpu_custom_call.1} parent=39 // pred_check_branch
          %267 = sbr.rel (%p265) target = $region48
        $region47: #{tpu_custom_call.1} parent=39 // pred_region
          %268 = dma.done [#allocation7], 9216
        $region48: #{tpu_custom_call.1} parent=39 // pred_fallthru
          _
        %s269 = sand.u32 %s43, 1
        %s270 = scalar_lea.sflag [#allocation4], %s269
        %s271 = sand.u32 %s43, 1
        %s272 = smul.addr %s271, 768
        %s273 = scalar_lea.vmem [#allocation3], %s272
        %p274 = pneg %p56
        %p275 = pneg %p53
        %p276 = pneg %p77
        %p277 = pneg %p74
        %p278 = pneg %p98
        %p279 = pneg %p95
        %p280 = pneg %p124
        %p281 = pneg %p121
        %s282 = smul.u32 3, %s28
        %p283 = scmp.lt.s32.totalorder %s282, 2
        %s284 = scalar_select %p283, %s282, 2
        %s285 = scalar_lea.vmem %s4, %s284
        %p286 = pneg %p150
        %p287 = pneg %p147
        %p288 = pneg %p178
        %p289 = pneg %p175
        %s290 = sand.u32 %s165, 1
        %s291 = scalar_lea.sflag [#allocation5], %s290
        %s292 = sand.u32 %s165, 1
        %s293 = smul.addr %s292, 768
        %s294 = scalar_lea.vmem [#allocation8], %s293
        %s295 = smul.u32 32, %s27
        %s296 = smul.u32 3, %s28
        %s297 = smul.u32 3, %s28
        %p298 = scmp.lt.s32.totalorder %s297, 2
        %s299 = scalar_select %p298, %s297, 2
        %s300 = scalar_lea.vmem %s4, %s299
        %s301 = smul.u32 3, %s28
        %s302 = smul.u32 32, %s27
        %s303 = smul.u32 3, %s28
        %p305 = scmp.eq.s32.totalorder %s28, 0
        // Predicated region
        $region49: #{tpu_custom_call.1} parent=39 // pred_check
          %p306 = pneg %p305
        $region50: #{tpu_custom_call.1} parent=39 // pred_check_branch
          %308 = sbr.rel (%p306) target = $region52
        $region51: #{tpu_custom_call.1} parent=39 // pred_region
          %v309 = vld [vmem:[%s260] sm:$0xff]
          %v310 = vld [vmem:[%s260 + $0x8] sm:$0xff]
          %v311 = vld [vmem:[%s260 + $0x10] sm:$0xff]
          %v312 = vld [vmem:[%s260 + $0x18] sm:$0xff]
          %v313 = vld [vmem:[%s260 + $0x20] sm:$0xff]
          %v314 = vld [vmem:[%s260 + $0x28] sm:$0xff]
          %v315 = vld [vmem:[%s260 + $0x30] sm:$0xff]
          %v316 = vld [vmem:[%s260 + $0x38] sm:$0xff]
          %v317 = vld [vmem:[%s260 + $0x40] sm:$0xff]
          %v318 = vld [vmem:[%s260 + $0x48] sm:$0xff]
          %v319 = vld [vmem:[%s260 + $0x50] sm:$0xff]
          %v320 = vld [vmem:[%s260 + $0x58] sm:$0xff]
          %v321 = vld [vmem:[%s260 + $0x60] sm:$0xff]
          %v322 = vld [vmem:[%s260 + $0x68] sm:$0xff]
          %v323 = vld [vmem:[%s260 + $0x70] sm:$0xff]
          %v324 = vld [vmem:[%s260 + $0x78] sm:$0xff]
          %v325 = vld [vmem:[%s260 + $0x80] sm:$0xff]
          %v326 = vld [vmem:[%s260 + $0x88] sm:$0xff]
          %v327 = vld [vmem:[%s260 + $0x90] sm:$0xff]
          %v328 = vld [vmem:[%s260 + $0x98] sm:$0xff]
          %v329 = vld [vmem:[%s260 + $0xa0] sm:$0xff]
          %v330 = vld [vmem:[%s260 + $0xa8] sm:$0xff]
          %v331 = vld [vmem:[%s260 + $0xb0] sm:$0xff]
          %v332 = vld [vmem:[%s260 + $0xb8] sm:$0xff]
          %v333 = vld [vmem:[%s260 + $0xc0] sm:$0xff]
          %v334 = vld [vmem:[%s260 + $0xc8] sm:$0xff]
          %v335 = vld [vmem:[%s260 + $0xd0] sm:$0xff]
          %v336 = vld [vmem:[%s260 + $0xd8] sm:$0xff]
          %v337 = vld [vmem:[%s260 + $0xe0] sm:$0xff]
          %v338 = vld [vmem:[%s260 + $0xe8] sm:$0xff]
          %v339 = vld [vmem:[%s260 + $0xf0] sm:$0xff]
          %v340 = vld [vmem:[%s260 + $0xf8] sm:$0xff]
          %v341 = vld [vmem:[%s260 + $0x100] sm:$0xff]
          %v342 = vld [vmem:[%s260 + $0x108] sm:$0xff]
          %v343 = vld [vmem:[%s260 + $0x110] sm:$0xff]
          %v344 = vld [vmem:[%s260 + $0x118] sm:$0xff]
          %v345 = vld [vmem:[%s260 + $0x120] sm:$0xff]
          %v346 = vld [vmem:[%s260 + $0x128] sm:$0xff]
          %v347 = vld [vmem:[%s260 + $0x130] sm:$0xff]
          %v348 = vld [vmem:[%s260 + $0x138] sm:$0xff]
          %v349 = vld [vmem:[%s260 + $0x140] sm:$0xff]
          %v350 = vld [vmem:[%s260 + $0x148] sm:$0xff]
          %v351 = vld [vmem:[%s260 + $0x150] sm:$0xff]
          %v352 = vld [vmem:[%s260 + $0x158] sm:$0xff]
          %v353 = vld [vmem:[%s260 + $0x160] sm:$0xff]
          %v354 = vld [vmem:[%s260 + $0x168] sm:$0xff]
          %v355 = vld [vmem:[%s260 + $0x170] sm:$0xff]
          %v356 = vld [vmem:[%s260 + $0x178] sm:$0xff]
          %v357 = vld [vmem:[%s260 + $0x180] sm:$0xff]
          %v358 = vld [vmem:[%s260 + $0x188] sm:$0xff]
          %v359 = vld [vmem:[%s260 + $0x190] sm:$0xff]
          %v360 = vld [vmem:[%s260 + $0x198] sm:$0xff]
          %v361 = vld [vmem:[%s260 + $0x1a0] sm:$0xff]
          %v362 = vld [vmem:[%s260 + $0x1a8] sm:$0xff]
          %v363 = vld [vmem:[%s260 + $0x1b0] sm:$0xff]
          %v364 = vld [vmem:[%s260 + $0x1b8] sm:$0xff]
          %v365 = vld [vmem:[%s260 + $0x1c0] sm:$0xff]
          %v366 = vld [vmem:[%s260 + $0x1c8] sm:$0xff]
          %v367 = vld [vmem:[%s260 + $0x1d0] sm:$0xff]
          %v368 = vld [vmem:[%s260 + $0x1d8] sm:$0xff]
          %v369 = vld [vmem:[%s260 + $0x1e0] sm:$0xff]
          %v370 = vld [vmem:[%s260 + $0x1e8] sm:$0xff]
          %v371 = vld [vmem:[%s260 + $0x1f0] sm:$0xff]
          %v372 = vld [vmem:[%s260 + $0x1f8] sm:$0xff]
          %v373 = vld [vmem:[%s260 + $0x200] sm:$0xff]
          %v374 = vld [vmem:[%s260 + $0x208] sm:$0xff]
          %v375 = vld [vmem:[%s260 + $0x210] sm:$0xff]
          %v376 = vld [vmem:[%s260 + $0x218] sm:$0xff]
          %v377 = vld [vmem:[%s260 + $0x220] sm:$0xff]
          %v378 = vld [vmem:[%s260 + $0x228] sm:$0xff]
          %v379 = vld [vmem:[%s260 + $0x230] sm:$0xff]
          %v380 = vld [vmem:[%s260 + $0x238] sm:$0xff]
          %v381 = vld [vmem:[%s260 + $0x240] sm:$0xff]
          %v382 = vld [vmem:[%s260 + $0x248] sm:$0xff]
          %v383 = vld [vmem:[%s260 + $0x250] sm:$0xff]
          %v384 = vld [vmem:[%s260 + $0x258] sm:$0xff]
          %v385 = vld [vmem:[%s260 + $0x260] sm:$0xff]
          %v386 = vld [vmem:[%s260 + $0x268] sm:$0xff]
          %v387 = vld [vmem:[%s260 + $0x270] sm:$0xff]
          %v388 = vld [vmem:[%s260 + $0x278] sm:$0xff]
          %v389 = vld [vmem:[%s260 + $0x280] sm:$0xff]
          %v390 = vld [vmem:[%s260 + $0x288] sm:$0xff]
          %v391 = vld [vmem:[%s260 + $0x290] sm:$0xff]
          %v392 = vld [vmem:[%s260 + $0x298] sm:$0xff]
          %v393 = vld [vmem:[%s260 + $0x2a0] sm:$0xff]
          %v394 = vld [vmem:[%s260 + $0x2a8] sm:$0xff]
          %v395 = vld [vmem:[%s260 + $0x2b0] sm:$0xff]
          %v396 = vld [vmem:[%s260 + $0x2b8] sm:$0xff]
          %v397 = vld [vmem:[%s260 + $0x2c0] sm:$0xff]
          %v398 = vld [vmem:[%s260 + $0x2c8] sm:$0xff]
          %v399 = vld [vmem:[%s260 + $0x2d0] sm:$0xff]
          %v400 = vld [vmem:[%s260 + $0x2d8] sm:$0xff]
          %v401 = vld [vmem:[%s260 + $0x2e0] sm:$0xff]
          %v402 = vld [vmem:[%s260 + $0x2e8] sm:$0xff]
          %v403 = vld [vmem:[%s260 + $0x2f0] sm:$0xff]
          %v404 = vld [vmem:[%s260 + $0x2f8] sm:$0xff]
          %v405 = vadd.f32 %v309, %v310
          %v406 = vadd.f32 %v405, %v311
          %407 = vadd.xlane.f32.xlu0 %v406
          %v408 = vpop.xlane.xlu0 %407
          %v409 = vadd.f32 %v312, %v313
          %v410 = vadd.f32 %v409, %v314
          %411 = vadd.xlane.f32.xlu0 %v410
          %v412 = vpop.xlane.xlu0 %411
          %v413 = vadd.f32 %v315, %v316
          %v414 = vadd.f32 %v413, %v317
          %415 = vadd.xlane.f32.xlu0 %v414
          %v416 = vpop.xlane.xlu0 %415
          %v417 = vadd.f32 %v318, %v319
          %v418 = vadd.f32 %v417, %v320
          %419 = vadd.xlane.f32.xlu0 %v418
          %v420 = vpop.xlane.xlu0 %419
          %v421 = vadd.f32 %v321, %v322
          %v422 = vadd.f32 %v421, %v323
          %423 = vadd.xlane.f32.xlu0 %v422
          %v424 = vpop.xlane.xlu0 %423
          %v425 = vadd.f32 %v324, %v325
          %v426 = vadd.f32 %v425, %v326
          %427 = vadd.xlane.f32.xlu0 %v426
          %v428 = vpop.xlane.xlu0 %427
          %v429 = vadd.f32 %v327, %v328
          %v430 = vadd.f32 %v429, %v329
          %431 = vadd.xlane.f32.xlu0 %v430
          %v432 = vpop.xlane.xlu0 %431
          %v433 = vadd.f32 %v330, %v331
          %v434 = vadd.f32 %v433, %v332
          %435 = vadd.xlane.f32.xlu0 %v434
          %v436 = vpop.xlane.xlu0 %435
          %v437 = vadd.f32 %v333, %v334
          %v438 = vadd.f32 %v437, %v335
          %439 = vadd.xlane.f32.xlu0 %v438
          %v440 = vpop.xlane.xlu0 %439
          %v441 = vadd.f32 %v336, %v337
          %v442 = vadd.f32 %v441, %v338
          %443 = vadd.xlane.f32.xlu0 %v442
          %v444 = vpop.xlane.xlu0 %443
          %v445 = vadd.f32 %v339, %v340
          %v446 = vadd.f32 %v445, %v341
          %447 = vadd.xlane.f32.xlu0 %v446
          %v448 = vpop.xlane.xlu0 %447
          %v449 = vadd.f32 %v342, %v343
          %v450 = vadd.f32 %v449, %v344
          %451 = vadd.xlane.f32.xlu0 %v450
          %v452 = vpop.xlane.xlu0 %451
          %v453 = vadd.f32 %v345, %v346
          %v454 = vadd.f32 %v453, %v347
          %455 = vadd.xlane.f32.xlu0 %v454
          %v456 = vpop.xlane.xlu0 %455
          %v457 = vadd.f32 %v348, %v349
          %v458 = vadd.f32 %v457, %v350
          %459 = vadd.xlane.f32.xlu0 %v458
          %v460 = vpop.xlane.xlu0 %459
          %v461 = vadd.f32 %v351, %v352
          %v462 = vadd.f32 %v461, %v353
          %463 = vadd.xlane.f32.xlu0 %v462
          %v464 = vpop.xlane.xlu0 %463
          %v465 = vadd.f32 %v354, %v355
          %v466 = vadd.f32 %v465, %v356
          %467 = vadd.xlane.f32.xlu0 %v466
          %v468 = vpop.xlane.xlu0 %467
          %v469 = vadd.f32 %v357, %v358
          %v470 = vadd.f32 %v469, %v359
          %471 = vadd.xlane.f32.xlu0 %v470
          %v472 = vpop.xlane.xlu0 %471
          %v473 = vadd.f32 %v360, %v361
          %v474 = vadd.f32 %v473, %v362
          %475 = vadd.xlane.f32.xlu0 %v474
          %v476 = vpop.xlane.xlu0 %475
          %v477 = vadd.f32 %v363, %v364
          %v478 = vadd.f32 %v477, %v365
          %479 = vadd.xlane.f32.xlu0 %v478
          %v480 = vpop.xlane.xlu0 %479
          %v481 = vadd.f32 %v366, %v367
          %v482 = vadd.f32 %v481, %v368
          %483 = vadd.xlane.f32.xlu0 %v482
          %v484 = vpop.xlane.xlu0 %483
          %v485 = vadd.f32 %v369, %v370
          %v486 = vadd.f32 %v485, %v371
          %487 = vadd.xlane.f32.xlu0 %v486
          %v488 = vpop.xlane.xlu0 %487
          %v489 = vadd.f32 %v372, %v373
          %v490 = vadd.f32 %v489, %v374
          %491 = vadd.xlane.f32.xlu0 %v490
          %v492 = vpop.xlane.xlu0 %491
          %v493 = vadd.f32 %v375, %v376
          %v494 = vadd.f32 %v493, %v377
          %495 = vadd.xlane.f32.xlu0 %v494
          %v496 = vpop.xlane.xlu0 %495
          %v497 = vadd.f32 %v378, %v379
          %v498 = vadd.f32 %v497, %v380
          %499 = vadd.xlane.f32.xlu0 %v498
          %v500 = vpop.xlane.xlu0 %499
          %v501 = vadd.f32 %v381, %v382
          %v502 = vadd.f32 %v501, %v383
          %503 = vadd.xlane.f32.xlu0 %v502
          %v504 = vpop.xlane.xlu0 %503
          %v505 = vadd.f32 %v384, %v385
          %v506 = vadd.f32 %v505, %v386
          %507 = vadd.xlane.f32.xlu0 %v506
          %v508 = vpop.xlane.xlu0 %507
          %v509 = vadd.f32 %v387, %v388
          %v510 = vadd.f32 %v509, %v389
          %511 = vadd.xlane.f32.xlu0 %v510
          %v512 = vpop.xlane.xlu0 %511
          %v513 = vadd.f32 %v390, %v391
          %v514 = vadd.f32 %v513, %v392
          %515 = vadd.xlane.f32.xlu0 %v514
          %v516 = vpop.xlane.xlu0 %515
          %v517 = vadd.f32 %v393, %v394
          %v518 = vadd.f32 %v517, %v395
          %519 = vadd.xlane.f32.xlu0 %v518
          %v520 = vpop.xlane.xlu0 %519
          %v521 = vadd.f32 %v396, %v397
          %v522 = vadd.f32 %v521, %v398
          %523 = vadd.xlane.f32.xlu0 %v522
          %v524 = vpop.xlane.xlu0 %523
          %v525 = vadd.f32 %v399, %v400
          %v526 = vadd.f32 %v525, %v401
          %527 = vadd.xlane.f32.xlu0 %v526
          %v528 = vpop.xlane.xlu0 %527
          %v529 = vadd.f32 %v402, %v403
          %v530 = vadd.f32 %v529, %v404
          %531 = vadd.xlane.f32.xlu0 %v530
          %v532 = vpop.xlane.xlu0 %531
          %v533 = vrcp.pop 384.0
          %v534 = vmul.f32 %v408, %v533
          %v535 = vmul.f32 %v412, %v533
          %v536 = vmul.f32 %v416, %v533
          %v537 = vmul.f32 %v420, %v533
          %v538 = vmul.f32 %v424, %v533
          %v539 = vmul.f32 %v428, %v533
          %v540 = vmul.f32 %v432, %v533
          %v541 = vmul.f32 %v436, %v533
          %v542 = vmul.f32 %v440, %v533
          %v543 = vmul.f32 %v444, %v533
          %v544 = vmul.f32 %v448, %v533
          %v545 = vmul.f32 %v452, %v533
          %v546 = vmul.f32 %v456, %v533
          %v547 = vmul.f32 %v460, %v533
          %v548 = vmul.f32 %v464, %v533
          %v549 = vmul.f32 %v468, %v533
          %v550 = vmul.f32 %v472, %v533
          %v551 = vmul.f32 %v476, %v533
          %v552 = vmul.f32 %v480, %v533
          %v553 = vmul.f32 %v484, %v533
          %v554 = vmul.f32 %v488, %v533
          %v555 = vmul.f32 %v492, %v533
          %v556 = vmul.f32 %v496, %v533
          %v557 = vmul.f32 %v500, %v533
          %v558 = vmul.f32 %v504, %v533
          %v559 = vmul.f32 %v508, %v533
          %v560 = vmul.f32 %v512, %v533
          %v561 = vmul.f32 %v516, %v533
          %v562 = vmul.f32 %v520, %v533
          %v563 = vmul.f32 %v524, %v533
          %v564 = vmul.f32 %v528, %v533
          %v565 = vmul.f32 %v532, %v533
          %v566 = vsub.f32 %v309, %v534
          %v567 = vsub.f32 %v310, %v534
          %v568 = vsub.f32 %v311, %v534
          %v569 = vsub.f32 %v312, %v535
          %v570 = vsub.f32 %v313, %v535
          %v571 = vsub.f32 %v314, %v535
          %v572 = vsub.f32 %v315, %v536
          %v573 = vsub.f32 %v316, %v536
          %v574 = vsub.f32 %v317, %v536
          %v575 = vsub.f32 %v318, %v537
          %v576 = vsub.f32 %v319, %v537
          %v577 = vsub.f32 %v320, %v537
          %v578 = vsub.f32 %v321, %v538
          %v579 = vsub.f32 %v322, %v538
          %v580 = vsub.f32 %v323, %v538
          %v581 = vsub.f32 %v324, %v539
          %v582 = vsub.f32 %v325, %v539
          %v583 = vsub.f32 %v326, %v539
          %v584 = vsub.f32 %v327, %v540
          %v585 = vsub.f32 %v328, %v540
          %v586 = vsub.f32 %v329, %v540
          %v587 = vsub.f32 %v330, %v541
          %v588 = vsub.f32 %v331, %v541
          %v589 = vsub.f32 %v332, %v541
          %v590 = vsub.f32 %v333, %v542
          %v591 = vsub.f32 %v334, %v542
          %v592 = vsub.f32 %v335, %v542
          %v593 = vsub.f32 %v336, %v543
          %v594 = vsub.f32 %v337, %v543
          %v595 = vsub.f32 %v338, %v543
          %v596 = vsub.f32 %v339, %v544
          %v597 = vsub.f32 %v340, %v544
          %v598 = vsub.f32 %v341, %v544
          %v599 = vsub.f32 %v342, %v545
          %v600 = vsub.f32 %v343, %v545
          %v601 = vsub.f32 %v344, %v545
          %v602 = vsub.f32 %v345, %v546
          %v603 = vsub.f32 %v346, %v546
          %v604 = vsub.f32 %v347, %v546
          %v605 = vsub.f32 %v348, %v547
          %v606 = vsub.f32 %v349, %v547
          %v607 = vsub.f32 %v350, %v547
          %v608 = vsub.f32 %v351, %v548
          %v609 = vsub.f32 %v352, %v548
          %v610 = vsub.f32 %v353, %v548
          %v611 = vsub.f32 %v354, %v549
          %v612 = vsub.f32 %v355, %v549
          %v613 = vsub.f32 %v356, %v549
          %v614 = vsub.f32 %v357, %v550
          %v615 = vsub.f32 %v358, %v550
          %v616 = vsub.f32 %v359, %v550
          %v617 = vsub.f32 %v360, %v551
          %v618 = vsub.f32 %v361, %v551
          %v619 = vsub.f32 %v362, %v551
          %v620 = vsub.f32 %v363, %v552
          %v621 = vsub.f32 %v364, %v552
          %v622 = vsub.f32 %v365, %v552
          %v623 = vsub.f32 %v366, %v553
          %v624 = vsub.f32 %v367, %v553
          %v625 = vsub.f32 %v368, %v553
          %v626 = vsub.f32 %v369, %v554
          %v627 = vsub.f32 %v370, %v554
          %v628 = vsub.f32 %v371, %v554
          %v629 = vsub.f32 %v372, %v555
          %v630 = vsub.f32 %v373, %v555
          %v631 = vsub.f32 %v374, %v555
          %v632 = vsub.f32 %v375, %v556
          %v633 = vsub.f32 %v376, %v556
          %v634 = vsub.f32 %v377, %v556
          %v635 = vsub.f32 %v378, %v557
          %v636 = vsub.f32 %v379, %v557
          %v637 = vsub.f32 %v380, %v557
          %v638 = vsub.f32 %v381, %v558
          %v639 = vsub.f32 %v382, %v558
          %v640 = vsub.f32 %v383, %v558
          %v641 = vsub.f32 %v384, %v559
          %v642 = vsub.f32 %v385, %v559
          %v643 = vsub.f32 %v386, %v559
          %v644 = vsub.f32 %v387, %v560
          %v645 = vsub.f32 %v388, %v560
          %v646 = vsub.f32 %v389, %v560
          %v647 = vsub.f32 %v390, %v561
          %v648 = vsub.f32 %v391, %v561
          %v649 = vsub.f32 %v392, %v561
          %v650 = vsub.f32 %v393, %v562
          %v651 = vsub.f32 %v394, %v562
          %v652 = vsub.f32 %v395, %v562
          %v653 = vsub.f32 %v396, %v563
          %v654 = vsub.f32 %v397, %v563
          %v655 = vsub.f32 %v398, %v563
          %v656 = vsub.f32 %v399, %v564
          %v657 = vsub.f32 %v400, %v564
          %v658 = vsub.f32 %v401, %v564
          %v659 = vsub.f32 %v402, %v565
          %v660 = vsub.f32 %v403, %v565
          %v661 = vsub.f32 %v404, %v565
          %v662 = vmul.f32 %v566, %v566
          %v663 = vmul.f32 %v567, %v567
          %v664 = vmul.f32 %v568, %v568
          %v665 = vmul.f32 %v569, %v569
          %v666 = vmul.f32 %v570, %v570
          %v667 = vmul.f32 %v571, %v571
          %v668 = vmul.f32 %v572, %v572
          %v669 = vmul.f32 %v573, %v573
          %v670 = vmul.f32 %v574, %v574
          %v671 = vmul.f32 %v575, %v575
          %v672 = vmul.f32 %v576, %v576
          %v673 = vmul.f32 %v577, %v577
          %v674 = vmul.f32 %v578, %v578
          %v675 = vmul.f32 %v579, %v579
          %v676 = vmul.f32 %v580, %v580
          %v677 = vmul.f32 %v581, %v581
          %v678 = vmul.f32 %v582, %v582
          %v679 = vmul.f32 %v583, %v583
          %v680 = vmul.f32 %v584, %v584
          %v681 = vmul.f32 %v585, %v585
          %v682 = vmul.f32 %v586, %v586
          %v683 = vmul.f32 %v587, %v587
          %v684 = vmul.f32 %v588, %v588
          %v685 = vmul.f32 %v589, %v589
          %v686 = vmul.f32 %v590, %v590
          %v687 = vmul.f32 %v591, %v591
          %v688 = vmul.f32 %v592, %v592
          %v689 = vmul.f32 %v593, %v593
          %v690 = vmul.f32 %v594, %v594
          %v691 = vmul.f32 %v595, %v595
          %v692 = vmul.f32 %v596, %v596
          %v693 = vmul.f32 %v597, %v597
          %v694 = vmul.f32 %v598, %v598
          %v695 = vmul.f32 %v599, %v599
          %v696 = vmul.f32 %v600, %v600
          %v697 = vmul.f32 %v601, %v601
          %v698 = vmul.f32 %v602, %v602
          %v699 = vmul.f32 %v603, %v603
          %v700 = vmul.f32 %v604, %v604
          %v701 = vmul.f32 %v605, %v605
          %v702 = vmul.f32 %v606, %v606
          %v703 = vmul.f32 %v607, %v607
          %v704 = vmul.f32 %v608, %v608
          %v705 = vmul.f32 %v609, %v609
          %v706 = vmul.f32 %v610, %v610
          %v707 = vmul.f32 %v611, %v611
          %v708 = vmul.f32 %v612, %v612
          %v709 = vmul.f32 %v613, %v613
          %v710 = vmul.f32 %v614, %v614
          %v711 = vmul.f32 %v615, %v615
          %v712 = vmul.f32 %v616, %v616
          %v713 = vmul.f32 %v617, %v617
          %v714 = vmul.f32 %v618, %v618
          %v715 = vmul.f32 %v619, %v619
          %v716 = vmul.f32 %v620, %v620
          %v717 = vmul.f32 %v621, %v621
          %v718 = vmul.f32 %v622, %v622
          %v719 = vmul.f32 %v623, %v623
          %v720 = vmul.f32 %v624, %v624
          %v721 = vmul.f32 %v625, %v625
          %v722 = vmul.f32 %v626, %v626
          %v723 = vmul.f32 %v627, %v627
          %v724 = vmul.f32 %v628, %v628
          %v725 = vmul.f32 %v629, %v629
          %v726 = vmul.f32 %v630, %v630
          %v727 = vmul.f32 %v631, %v631
          %v728 = vmul.f32 %v632, %v632
          %v729 = vmul.f32 %v633, %v633
          %v730 = vmul.f32 %v634, %v634
          %v731 = vmul.f32 %v635, %v635
          %v732 = vmul.f32 %v636, %v636
          %v733 = vmul.f32 %v637, %v637
          %v734 = vmul.f32 %v638, %v638
          %v735 = vmul.f32 %v639, %v639
          %v736 = vmul.f32 %v640, %v640
          %v737 = vmul.f32 %v641, %v641
          %v738 = vmul.f32 %v642, %v642
          %v739 = vmul.f32 %v643, %v643
          %v740 = vmul.f32 %v644, %v644
          %v741 = vmul.f32 %v645, %v645
          %v742 = vmul.f32 %v646, %v646
          %v743 = vmul.f32 %v647, %v647
          %v744 = vmul.f32 %v648, %v648
          %v745 = vmul.f32 %v649, %v649
          %v746 = vmul.f32 %v650, %v650
          %v747 = vmul.f32 %v651, %v651
          %v748 = vmul.f32 %v652, %v652
          %v749 = vmul.f32 %v653, %v653
          %v750 = vmul.f32 %v654, %v654
          %v751 = vmul.f32 %v655, %v655
          %v752 = vmul.f32 %v656, %v656
          %v753 = vmul.f32 %v657, %v657
          %v754 = vmul.f32 %v658, %v658
          %v755 = vmul.f32 %v659, %v659
          %v756 = vmul.f32 %v660, %v660
          %v757 = vmul.f32 %v661, %v661
          %v758 = vadd.f32 %v662, %v663
          %v759 = vadd.f32 %v758, %v664
          %760 = vadd.xlane.f32.xlu0 %v759
          %v761 = vpop.xlane.xlu0 %760
          %v762 = vadd.f32 %v665, %v666
          %v763 = vadd.f32 %v762, %v667
          %764 = vadd.xlane.f32.xlu0 %v763
          %v765 = vpop.xlane.xlu0 %764
          %v766 = vadd.f32 %v668, %v669
          %v767 = vadd.f32 %v766, %v670
          %768 = vadd.xlane.f32.xlu0 %v767
          %v769 = vpop.xlane.xlu0 %768
          %v770 = vadd.f32 %v671, %v672
          %v771 = vadd.f32 %v770, %v673
          %772 = vadd.xlane.f32.xlu0 %v771
          %v773 = vpop.xlane.xlu0 %772
          %v774 = vadd.f32 %v674, %v675
          %v775 = vadd.f32 %v774, %v676
          %776 = vadd.xlane.f32.xlu0 %v775
          %v777 = vpop.xlane.xlu0 %776
          %v778 = vadd.f32 %v677, %v678
          %v779 = vadd.f32 %v778, %v679
          %780 = vadd.xlane.f32.xlu0 %v779
          %v781 = vpop.xlane.xlu0 %780
          %v782 = vadd.f32 %v680, %v681
          %v783 = vadd.f32 %v782, %v682
          %784 = vadd.xlane.f32.xlu0 %v783
          %v785 = vpop.xlane.xlu0 %784
          %v786 = vadd.f32 %v683, %v684
          %v787 = vadd.f32 %v786, %v685
          %788 = vadd.xlane.f32.xlu0 %v787
          %v789 = vpop.xlane.xlu0 %788
          %v790 = vadd.f32 %v686, %v687
          %v791 = vadd.f32 %v790, %v688
          %792 = vadd.xlane.f32.xlu0 %v791
          %v793 = vpop.xlane.xlu0 %792
          %v794 = vadd.f32 %v689, %v690
          %v795 = vadd.f32 %v794, %v691
          %796 = vadd.xlane.f32.xlu0 %v795
          %v797 = vpop.xlane.xlu0 %796
          %v798 = vadd.f32 %v692, %v693
          %v799 = vadd.f32 %v798, %v694
          %800 = vadd.xlane.f32.xlu0 %v799
          %v801 = vpop.xlane.xlu0 %800
          %v802 = vadd.f32 %v695, %v696
          %v803 = vadd.f32 %v802, %v697
          %804 = vadd.xlane.f32.xlu0 %v803
          %v805 = vpop.xlane.xlu0 %804
          %v806 = vadd.f32 %v698, %v699
          %v807 = vadd.f32 %v806, %v700
          %808 = vadd.xlane.f32.xlu0 %v807
          %v809 = vpop.xlane.xlu0 %808
          %v810 = vadd.f32 %v701, %v702
          %v811 = vadd.f32 %v810, %v703
          %812 = vadd.xlane.f32.xlu0 %v811
          %v813 = vpop.xlane.xlu0 %812
          %v814 = vadd.f32 %v704, %v705
          %v815 = vadd.f32 %v814, %v706
          %816 = vadd.xlane.f32.xlu0 %v815
          %v817 = vpop.xlane.xlu0 %816
          %v818 = vadd.f32 %v707, %v708
          %v819 = vadd.f32 %v818, %v709
          %820 = vadd.xlane.f32.xlu0 %v819
          %v821 = vpop.xlane.xlu0 %820
          %v822 = vadd.f32 %v710, %v711
          %v823 = vadd.f32 %v822, %v712
          %824 = vadd.xlane.f32.xlu0 %v823
          %v825 = vpop.xlane.xlu0 %824
          %v826 = vadd.f32 %v713, %v714
          %v827 = vadd.f32 %v826, %v715
          %828 = vadd.xlane.f32.xlu0 %v827
          %v829 = vpop.xlane.xlu0 %828
          %v830 = vadd.f32 %v716, %v717
          %v831 = vadd.f32 %v830, %v718
          %832 = vadd.xlane.f32.xlu0 %v831
          %v833 = vpop.xlane.xlu0 %832
          %v834 = vadd.f32 %v719, %v720
          %v835 = vadd.f32 %v834, %v721
          %836 = vadd.xlane.f32.xlu0 %v835
          %v837 = vpop.xlane.xlu0 %836
          %v838 = vadd.f32 %v722, %v723
          %v839 = vadd.f32 %v838, %v724
          %840 = vadd.xlane.f32.xlu0 %v839
          %v841 = vpop.xlane.xlu0 %840
          %v842 = vadd.f32 %v725, %v726
          %v843 = vadd.f32 %v842, %v727
          %844 = vadd.xlane.f32.xlu0 %v843
          %v845 = vpop.xlane.xlu0 %844
          %v846 = vadd.f32 %v728, %v729
          %v847 = vadd.f32 %v846, %v730
          %848 = vadd.xlane.f32.xlu0 %v847
          %v849 = vpop.xlane.xlu0 %848
          %v850 = vadd.f32 %v731, %v732
          %v851 = vadd.f32 %v850, %v733
          %852 = vadd.xlane.f32.xlu0 %v851
          %v853 = vpop.xlane.xlu0 %852
          %v854 = vadd.f32 %v734, %v735
          %v855 = vadd.f32 %v854, %v736
          %856 = vadd.xlane.f32.xlu0 %v855
          %v857 = vpop.xlane.xlu0 %856
          %v858 = vadd.f32 %v737, %v738
          %v859 = vadd.f32 %v858, %v739
          %860 = vadd.xlane.f32.xlu0 %v859
          %v861 = vpop.xlane.xlu0 %860
          %v862 = vadd.f32 %v740, %v741
          %v863 = vadd.f32 %v862, %v742
          %864 = vadd.xlane.f32.xlu0 %v863
          %v865 = vpop.xlane.xlu0 %864
          %v866 = vadd.f32 %v743, %v744
          %v867 = vadd.f32 %v866, %v745
          %868 = vadd.xlane.f32.xlu0 %v867
          %v869 = vpop.xlane.xlu0 %868
          %v870 = vadd.f32 %v746, %v747
          %v871 = vadd.f32 %v870, %v748
          %872 = vadd.xlane.f32.xlu0 %v871
          %v873 = vpop.xlane.xlu0 %872
          %v874 = vadd.f32 %v749, %v750
          %v875 = vadd.f32 %v874, %v751
          %876 = vadd.xlane.f32.xlu0 %v875
          %v877 = vpop.xlane.xlu0 %876
          %v878 = vadd.f32 %v752, %v753
          %v879 = vadd.f32 %v878, %v754
          %880 = vadd.xlane.f32.xlu0 %v879
          %v881 = vpop.xlane.xlu0 %880
          %v882 = vadd.f32 %v755, %v756
          %v883 = vadd.f32 %v882, %v757
          %884 = vadd.xlane.f32.xlu0 %v883
          %v885 = vpop.xlane.xlu0 %884
          %v886 = vmul.f32 %v761, %v533
          %v887 = vmul.f32 %v765, %v533
          %v888 = vmul.f32 %v769, %v533
          %v889 = vmul.f32 %v773, %v533
          %v890 = vmul.f32 %v777, %v533
          %v891 = vmul.f32 %v781, %v533
          %v892 = vmul.f32 %v785, %v533
          %v893 = vmul.f32 %v789, %v533
          %v894 = vmul.f32 %v793, %v533
          %v895 = vmul.f32 %v797, %v533
          %v896 = vmul.f32 %v801, %v533
          %v897 = vmul.f32 %v805, %v533
          %v898 = vmul.f32 %v809, %v533
          %v899 = vmul.f32 %v813, %v533
          %v900 = vmul.f32 %v817, %v533
          %v901 = vmul.f32 %v821, %v533
          %v902 = vmul.f32 %v825, %v533
          %v903 = vmul.f32 %v829, %v533
          %v904 = vmul.f32 %v833, %v533
          %v905 = vmul.f32 %v837, %v533
          %v906 = vmul.f32 %v841, %v533
          %v907 = vmul.f32 %v845, %v533
          %v908 = vmul.f32 %v849, %v533
          %v909 = vmul.f32 %v853, %v533
          %v910 = vmul.f32 %v857, %v533
          %v911 = vmul.f32 %v861, %v533
          %v912 = vmul.f32 %v865, %v533
          %v913 = vmul.f32 %v869, %v533
          %v914 = vmul.f32 %v873, %v533
          %v915 = vmul.f32 %v877, %v533
          %v916 = vmul.f32 %v881, %v533
          %v917 = vmul.f32 %v885, %v533
          %v918 = vadd.f32 %v886, 1e-05
          %v919 = vadd.f32 %v887, 1e-05
          %v920 = vadd.f32 %v888, 1e-05
          %v921 = vadd.f32 %v889, 1e-05
          %v922 = vadd.f32 %v890, 1e-05
          %v923 = vadd.f32 %v891, 1e-05
          %v924 = vadd.f32 %v892, 1e-05
          %v925 = vadd.f32 %v893, 1e-05
          %v926 = vadd.f32 %v894, 1e-05
          %v927 = vadd.f32 %v895, 1e-05
          %v928 = vadd.f32 %v896, 1e-05
          %v929 = vadd.f32 %v897, 1e-05
          %v930 = vadd.f32 %v898, 1e-05
          %v931 = vadd.f32 %v899, 1e-05
          %v932 = vadd.f32 %v900, 1e-05
          %v933 = vadd.f32 %v901, 1e-05
          %v934 = vadd.f32 %v902, 1e-05
          %v935 = vadd.f32 %v903, 1e-05
          %v936 = vadd.f32 %v904, 1e-05
          %v937 = vadd.f32 %v905, 1e-05
          %v938 = vadd.f32 %v906, 1e-05
          %v939 = vadd.f32 %v907, 1e-05
          %v940 = vadd.f32 %v908, 1e-05
          %v941 = vadd.f32 %v909, 1e-05
          %v942 = vadd.f32 %v910, 1e-05
          %v943 = vadd.f32 %v911, 1e-05
          %v944 = vadd.f32 %v912, 1e-05
          %v945 = vadd.f32 %v913, 1e-05
          %v946 = vadd.f32 %v914, 1e-05
          %v947 = vadd.f32 %v915, 1e-05
          %v948 = vadd.f32 %v916, 1e-05
          %v949 = vadd.f32 %v917, 1e-05
          %v950 = vrsqrt.pop %v918
          %v951 = vrsqrt.pop %v919
          %v952 = vrsqrt.pop %v920
          %v953 = vrsqrt.pop %v921
          %v954 = vrsqrt.pop %v922
          %v955 = vrsqrt.pop %v923
          %v956 = vrsqrt.pop %v924
          %v957 = vrsqrt.pop %v925
          %v958 = vrsqrt.pop %v926
          %v959 = vrsqrt.pop %v927
          %v960 = vrsqrt.pop %v928
          %v961 = vrsqrt.pop %v929
          %v962 = vrsqrt.pop %v930
          %v963 = vrsqrt.pop %v931
          %v964 = vrsqrt.pop %v932
          %v965 = vrsqrt.pop %v933
          %v966 = vrsqrt.pop %v934
          %v967 = vrsqrt.pop %v935
          %v968 = vrsqrt.pop %v936
          %v969 = vrsqrt.pop %v937
          %v970 = vrsqrt.pop %v938
          %v971 = vrsqrt.pop %v939
          %v972 = vrsqrt.pop %v940
          %v973 = vrsqrt.pop %v941
          %v974 = vrsqrt.pop %v942
          %v975 = vrsqrt.pop %v943
          %v976 = vrsqrt.pop %v944
          %v977 = vrsqrt.pop %v945
          %v978 = vrsqrt.pop %v946
          %v979 = vrsqrt.pop %v947
          %v980 = vrsqrt.pop %v948
          %v981 = vrsqrt.pop %v949
          %v982 = vmul.f32 %v566, %v950
          %v983 = vmul.f32 %v567, %v950
          %v984 = vmul.f32 %v568, %v950
          %v985 = vmul.f32 %v569, %v951
          %v986 = vmul.f32 %v570, %v951
          %v987 = vmul.f32 %v571, %v951
          %v988 = vmul.f32 %v572, %v952
          %v989 = vmul.f32 %v573, %v952
          %v990 = vmul.f32 %v574, %v952
          %v991 = vmul.f32 %v575, %v953
          %v992 = vmul.f32 %v576, %v953
          %v993 = vmul.f32 %v577, %v953
          %v994 = vmul.f32 %v578, %v954
          %v995 = vmul.f32 %v579, %v954
          %v996 = vmul.f32 %v580, %v954
          %v997 = vmul.f32 %v581, %v955
          %v998 = vmul.f32 %v582, %v955
          %v999 = vmul.f32 %v583, %v955
          %v1000 = vmul.f32 %v584, %v956
          %v1001 = vmul.f32 %v585, %v956
          %v1002 = vmul.f32 %v586, %v956
          %v1003 = vmul.f32 %v587, %v957
          %v1004 = vmul.f32 %v588, %v957
          %v1005 = vmul.f32 %v589, %v957
          %v1006 = vmul.f32 %v590, %v958
          %v1007 = vmul.f32 %v591, %v958
          %v1008 = vmul.f32 %v592, %v958
          %v1009 = vmul.f32 %v593, %v959
          %v1010 = vmul.f32 %v594, %v959
          %v1011 = vmul.f32 %v595, %v959
          %v1012 = vmul.f32 %v596, %v960
          %v1013 = vmul.f32 %v597, %v960
          %v1014 = vmul.f32 %v598, %v960
          %v1015 = vmul.f32 %v599, %v961
          %v1016 = vmul.f32 %v600, %v961
          %v1017 = vmul.f32 %v601, %v961
          %v1018 = vmul.f32 %v602, %v962
          %v1019 = vmul.f32 %v603, %v962
          %v1020 = vmul.f32 %v604, %v962
          %v1021 = vmul.f32 %v605, %v963
          %v1022 = vmul.f32 %v606, %v963
          %v1023 = vmul.f32 %v607, %v963
          %v1024 = vmul.f32 %v608, %v964
          %v1025 = vmul.f32 %v609, %v964
          %v1026 = vmul.f32 %v610, %v964
          %v1027 = vmul.f32 %v611, %v965
          %v1028 = vmul.f32 %v612, %v965
          %v1029 = vmul.f32 %v613, %v965
          %v1030 = vmul.f32 %v614, %v966
          %v1031 = vmul.f32 %v615, %v966
          %v1032 = vmul.f32 %v616, %v966
          %v1033 = vmul.f32 %v617, %v967
          %v1034 = vmul.f32 %v618, %v967
          %v1035 = vmul.f32 %v619, %v967
          %v1036 = vmul.f32 %v620, %v968
          %v1037 = vmul.f32 %v621, %v968
          %v1038 = vmul.f32 %v622, %v968
          %v1039 = vmul.f32 %v623, %v969
          %v1040 = vmul.f32 %v624, %v969
          %v1041 = vmul.f32 %v625, %v969
          %v1042 = vmul.f32 %v626, %v970
          %v1043 = vmul.f32 %v627, %v970
          %v1044 = vmul.f32 %v628, %v970
          %v1045 = vmul.f32 %v629, %v971
          %v1046 = vmul.f32 %v630, %v971
          %v1047 = vmul.f32 %v631, %v971
          %v1048 = vmul.f32 %v632, %v972
          %v1049 = vmul.f32 %v633, %v972
          %v1050 = vmul.f32 %v634, %v972
          %v1051 = vmul.f32 %v635, %v973
          %v1052 = vmul.f32 %v636, %v973
          %v1053 = vmul.f32 %v637, %v973
          %v1054 = vmul.f32 %v638, %v974
          %v1055 = vmul.f32 %v639, %v974
          %v1056 = vmul.f32 %v640, %v974
          %v1057 = vmul.f32 %v641, %v975
          %v1058 = vmul.f32 %v642, %v975
          %v1059 = vmul.f32 %v643, %v975
          %v1060 = vmul.f32 %v644, %v976
          %v1061 = vmul.f32 %v645, %v976
          %v1062 = vmul.f32 %v646, %v976
          %v1063 = vmul.f32 %v647, %v977
          %v1064 = vmul.f32 %v648, %v977
          %v1065 = vmul.f32 %v649, %v977
          %v1066 = vmul.f32 %v650, %v978
          %v1067 = vmul.f32 %v651, %v978
          %v1068 = vmul.f32 %v652, %v978
          %v1069 = vmul.f32 %v653, %v979
          %v1070 = vmul.f32 %v654, %v979
          %v1071 = vmul.f32 %v655, %v979
          %v1072 = vmul.f32 %v656, %v980
          %v1073 = vmul.f32 %v657, %v980
          %v1074 = vmul.f32 %v658, %v980
          %v1075 = vmul.f32 %v659, %v981
          %v1076 = vmul.f32 %v660, %v981
          %v1077 = vmul.f32 %v661, %v981
          %v1078 = vld [vmem:[%s1] sm:$0x7]
          %v1080 = vlaneseq
          %v1081 = vshrl.u32 %v1080, 7
          %v1082 = vsub.s32 0, %v1081
          %v1083 = vrot.slane %v1078, %v1082
          %v1084 = vlaneseq
          %v1085 = vshrl.u32 %v1084, 7
          %v1086 = vsub.s32 1, %v1085
          %v1087 = vrot.slane %v1078, %v1086
          %v1088 = vlaneseq
          %v1089 = vshrl.u32 %v1088, 7
          %v1090 = vsub.s32 2, %v1089
          %v1091 = vrot.slane %v1078, %v1090
          %v1095 = vmul.f32 %v982, %v1083
          %v1096 = vmul.f32 %v983, %v1087
          %v1097 = vmul.f32 %v984, %v1091
          %v1098 = vmul.f32 %v985, %v1083
          %v1099 = vmul.f32 %v986, %v1087
          %v1100 = vmul.f32 %v987, %v1091
          %v1101 = vmul.f32 %v988, %v1083
          %v1102 = vmul.f32 %v989, %v1087
          %v1103 = vmul.f32 %v990, %v1091
          %v1104 = vmul.f32 %v991, %v1083
          %v1105 = vmul.f32 %v992, %v1087
          %v1106 = vmul.f32 %v993, %v1091
          %v1107 = vmul.f32 %v994, %v1083
          %v1108 = vmul.f32 %v995, %v1087
          %v1109 = vmul.f32 %v996, %v1091
          %v1110 = vmul.f32 %v997, %v1083
          %v1111 = vmul.f32 %v998, %v1087
          %v1112 = vmul.f32 %v999, %v1091
          %v1113 = vmul.f32 %v1000, %v1083
          %v1114 = vmul.f32 %v1001, %v1087
          %v1115 = vmul.f32 %v1002, %v1091
          %v1116 = vmul.f32 %v1003, %v1083
          %v1117 = vmul.f32 %v1004, %v1087
          %v1118 = vmul.f32 %v1005, %v1091
          %v1119 = vmul.f32 %v1006, %v1083
          %v1120 = vmul.f32 %v1007, %v1087
          %v1121 = vmul.f32 %v1008, %v1091
          %v1122 = vmul.f32 %v1009, %v1083
          %v1123 = vmul.f32 %v1010, %v1087
          %v1124 = vmul.f32 %v1011, %v1091
          %v1125 = vmul.f32 %v1012, %v1083
          %v1126 = vmul.f32 %v1013, %v1087
          %v1127 = vmul.f32 %v1014, %v1091
          %v1128 = vmul.f32 %v1015, %v1083
          %v1129 = vmul.f32 %v1016, %v1087
          %v1130 = vmul.f32 %v1017, %v1091
          %v1131 = vmul.f32 %v1018, %v1083
          %v1132 = vmul.f32 %v1019, %v1087
          %v1133 = vmul.f32 %v1020, %v1091
          %v1134 = vmul.f32 %v1021, %v1083
          %v1135 = vmul.f32 %v1022, %v1087
          %v1136 = vmul.f32 %v1023, %v1091
          %v1137 = vmul.f32 %v1024, %v1083
          %v1138 = vmul.f32 %v1025, %v1087
          %v1139 = vmul.f32 %v1026, %v1091
          %v1140 = vmul.f32 %v1027, %v1083
          %v1141 = vmul.f32 %v1028, %v1087
          %v1142 = vmul.f32 %v1029, %v1091
          %v1143 = vmul.f32 %v1030, %v1083
          %v1144 = vmul.f32 %v1031, %v1087
          %v1145 = vmul.f32 %v1032, %v1091
          %v1146 = vmul.f32 %v1033, %v1083
          %v1147 = vmul.f32 %v1034, %v1087
          %v1148 = vmul.f32 %v1035, %v1091
          %v1149 = vmul.f32 %v1036, %v1083
          %v1150 = vmul.f32 %v1037, %v1087
          %v1151 = vmul.f32 %v1038, %v1091
          %v1152 = vmul.f32 %v1039, %v1083
          %v1153 = vmul.f32 %v1040, %v1087
          %v1154 = vmul.f32 %v1041, %v1091
          %v1155 = vmul.f32 %v1042, %v1083
          %v1156 = vmul.f32 %v1043, %v1087
          %v1157 = vmul.f32 %v1044, %v1091
          %v1158 = vmul.f32 %v1045, %v1083
          %v1159 = vmul.f32 %v1046, %v1087
          %v1160 = vmul.f32 %v1047, %v1091
          %v1161 = vmul.f32 %v1048, %v1083
          %v1162 = vmul.f32 %v1049, %v1087
          %v1163 = vmul.f32 %v1050, %v1091
          %v1164 = vmul.f32 %v1051, %v1083
          %v1165 = vmul.f32 %v1052, %v1087
          %v1166 = vmul.f32 %v1053, %v1091
          %v1167 = vmul.f32 %v1054, %v1083
          %v1168 = vmul.f32 %v1055, %v1087
          %v1169 = vmul.f32 %v1056, %v1091
          %v1170 = vmul.f32 %v1057, %v1083
          %v1171 = vmul.f32 %v1058, %v1087
          %v1172 = vmul.f32 %v1059, %v1091
          %v1173 = vmul.f32 %v1060, %v1083
          %v1174 = vmul.f32 %v1061, %v1087
          %v1175 = vmul.f32 %v1062, %v1091
          %v1176 = vmul.f32 %v1063, %v1083
          %v1177 = vmul.f32 %v1064, %v1087
          %v1178 = vmul.f32 %v1065, %v1091
          %v1179 = vmul.f32 %v1066, %v1083
          %v1180 = vmul.f32 %v1067, %v1087
          %v1181 = vmul.f32 %v1068, %v1091
          %v1182 = vmul.f32 %v1069, %v1083
          %v1183 = vmul.f32 %v1070, %v1087
          %v1184 = vmul.f32 %v1071, %v1091
          %v1185 = vmul.f32 %v1072, %v1083
          %v1186 = vmul.f32 %v1073, %v1087
          %v1187 = vmul.f32 %v1074, %v1091
          %v1188 = vmul.f32 %v1075, %v1083
          %v1189 = vmul.f32 %v1076, %v1087
          %v1190 = vmul.f32 %v1077, %v1091
          %v1191 = vld [vmem:[%s2] sm:$0x7]
          %v1193 = vlaneseq
          %v1194 = vshrl.u32 %v1193, 7
          %v1195 = vsub.s32 0, %v1194
          %v1196 = vrot.slane %v1191, %v1195
          %v1197 = vlaneseq
          %v1198 = vshrl.u32 %v1197, 7
          %v1199 = vsub.s32 1, %v1198
          %v1200 = vrot.slane %v1191, %v1199
          %v1201 = vlaneseq
          %v1202 = vshrl.u32 %v1201, 7
          %v1203 = vsub.s32 2, %v1202
          %v1204 = vrot.slane %v1191, %v1203
          %v1208 = vadd.f32 %v1095, %v1196
          %v1209 = vadd.f32 %v1096, %v1200
          %v1210 = vadd.f32 %v1097, %v1204
          %v1211 = vadd.f32 %v1098, %v1196
          %v1212 = vadd.f32 %v1099, %v1200
          %v1213 = vadd.f32 %v1100, %v1204
          %v1214 = vadd.f32 %v1101, %v1196
          %v1215 = vadd.f32 %v1102, %v1200
          %v1216 = vadd.f32 %v1103, %v1204
          %v1217 = vadd.f32 %v1104, %v1196
          %v1218 = vadd.f32 %v1105, %v1200
          %v1219 = vadd.f32 %v1106, %v1204
          %v1220 = vadd.f32 %v1107, %v1196
          %v1221 = vadd.f32 %v1108, %v1200
          %v1222 = vadd.f32 %v1109, %v1204
          %v1223 = vadd.f32 %v1110, %v1196
          %v1224 = vadd.f32 %v1111, %v1200
          %v1225 = vadd.f32 %v1112, %v1204
          %v1226 = vadd.f32 %v1113, %v1196
          %v1227 = vadd.f32 %v1114, %v1200
          %v1228 = vadd.f32 %v1115, %v1204
          %v1229 = vadd.f32 %v1116, %v1196
          %v1230 = vadd.f32 %v1117, %v1200
          %v1231 = vadd.f32 %v1118, %v1204
          %v1232 = vadd.f32 %v1119, %v1196
          %v1233 = vadd.f32 %v1120, %v1200
          %v1234 = vadd.f32 %v1121, %v1204
          %v1235 = vadd.f32 %v1122, %v1196
          %v1236 = vadd.f32 %v1123, %v1200
          %v1237 = vadd.f32 %v1124, %v1204
          %v1238 = vadd.f32 %v1125, %v1196
          %v1239 = vadd.f32 %v1126, %v1200
          %v1240 = vadd.f32 %v1127, %v1204
          %v1241 = vadd.f32 %v1128, %v1196
          %v1242 = vadd.f32 %v1129, %v1200
          %v1243 = vadd.f32 %v1130, %v1204
          %v1244 = vadd.f32 %v1131, %v1196
          %v1245 = vadd.f32 %v1132, %v1200
          %v1246 = vadd.f32 %v1133, %v1204
          %v1247 = vadd.f32 %v1134, %v1196
          %v1248 = vadd.f32 %v1135, %v1200
          %v1249 = vadd.f32 %v1136, %v1204
          %v1250 = vadd.f32 %v1137, %v1196
          %v1251 = vadd.f32 %v1138, %v1200
          %v1252 = vadd.f32 %v1139, %v1204
          %v1253 = vadd.f32 %v1140, %v1196
          %v1254 = vadd.f32 %v1141, %v1200
          %v1255 = vadd.f32 %v1142, %v1204
          %v1256 = vadd.f32 %v1143, %v1196
          %v1257 = vadd.f32 %v1144, %v1200
          %v1258 = vadd.f32 %v1145, %v1204
          %v1259 = vadd.f32 %v1146, %v1196
          %v1260 = vadd.f32 %v1147, %v1200
          %v1261 = vadd.f32 %v1148, %v1204
          %v1262 = vadd.f32 %v1149, %v1196
          %v1263 = vadd.f32 %v1150, %v1200
          %v1264 = vadd.f32 %v1151, %v1204
          %v1265 = vadd.f32 %v1152, %v1196
          %v1266 = vadd.f32 %v1153, %v1200
          %v1267 = vadd.f32 %v1154, %v1204
          %v1268 = vadd.f32 %v1155, %v1196
          %v1269 = vadd.f32 %v1156, %v1200
          %v1270 = vadd.f32 %v1157, %v1204
          %v1271 = vadd.f32 %v1158, %v1196
          %v1272 = vadd.f32 %v1159, %v1200
          %v1273 = vadd.f32 %v1160, %v1204
          %v1274 = vadd.f32 %v1161, %v1196
          %v1275 = vadd.f32 %v1162, %v1200
          %v1276 = vadd.f32 %v1163, %v1204
          %v1277 = vadd.f32 %v1164, %v1196
          %v1278 = vadd.f32 %v1165, %v1200
          %v1279 = vadd.f32 %v1166, %v1204
          %v1280 = vadd.f32 %v1167, %v1196
          %v1281 = vadd.f32 %v1168, %v1200
          %v1282 = vadd.f32 %v1169, %v1204
          %v1283 = vadd.f32 %v1170, %v1196
          %v1284 = vadd.f32 %v1171, %v1200
          %v1285 = vadd.f32 %v1172, %v1204
          %v1286 = vadd.f32 %v1173, %v1196
          %v1287 = vadd.f32 %v1174, %v1200
          %v1288 = vadd.f32 %v1175, %v1204
          %v1289 = vadd.f32 %v1176, %v1196
          %v1290 = vadd.f32 %v1177, %v1200
          %v1291 = vadd.f32 %v1178, %v1204
          %v1292 = vadd.f32 %v1179, %v1196
          %v1293 = vadd.f32 %v1180, %v1200
          %v1294 = vadd.f32 %v1181, %v1204
          %v1295 = vadd.f32 %v1182, %v1196
          %v1296 = vadd.f32 %v1183, %v1200
          %v1297 = vadd.f32 %v1184, %v1204
          %v1298 = vadd.f32 %v1185, %v1196
          %v1299 = vadd.f32 %v1186, %v1200
          %v1300 = vadd.f32 %v1187, %v1204
          %v1301 = vadd.f32 %v1188, %v1196
          %v1302 = vadd.f32 %v1189, %v1200
          %v1303 = vadd.f32 %v1190, %v1204
          %v1304 = vpack.c.bf16 %v1211, %v1208
          %v1305 = vpack.c.bf16 %v1212, %v1209
          %v1306 = vpack.c.bf16 %v1213, %v1210
          %v1307 = vpack.c.bf16 %v1217, %v1214
          %v1308 = vpack.c.bf16 %v1218, %v1215
          %v1309 = vpack.c.bf16 %v1219, %v1216
          %v1310 = vpack.c.bf16 %v1223, %v1220
          %v1311 = vpack.c.bf16 %v1224, %v1221
          %v1312 = vpack.c.bf16 %v1225, %v1222
          %v1313 = vpack.c.bf16 %v1229, %v1226
          %v1314 = vpack.c.bf16 %v1230, %v1227
          %v1315 = vpack.c.bf16 %v1231, %v1228
          %v1316 = vpack.c.bf16 %v1235, %v1232
          %v1317 = vpack.c.bf16 %v1236, %v1233
          %v1318 = vpack.c.bf16 %v1237, %v1234
          %v1319 = vpack.c.bf16 %v1241, %v1238
          %v1320 = vpack.c.bf16 %v1242, %v1239
          %v1321 = vpack.c.bf16 %v1243, %v1240
          %v1322 = vpack.c.bf16 %v1247, %v1244
          %v1323 = vpack.c.bf16 %v1248, %v1245
          %v1324 = vpack.c.bf16 %v1249, %v1246
          %v1325 = vpack.c.bf16 %v1253, %v1250
          %v1326 = vpack.c.bf16 %v1254, %v1251
          %v1327 = vpack.c.bf16 %v1255, %v1252
          %v1328 = vpack.c.bf16 %v1259, %v1256
          %v1329 = vpack.c.bf16 %v1260, %v1257
          %v1330 = vpack.c.bf16 %v1261, %v1258
          %v1331 = vpack.c.bf16 %v1265, %v1262
          %v1332 = vpack.c.bf16 %v1266, %v1263
          %v1333 = vpack.c.bf16 %v1267, %v1264
          %v1334 = vpack.c.bf16 %v1271, %v1268
          %v1335 = vpack.c.bf16 %v1272, %v1269
          %v1336 = vpack.c.bf16 %v1273, %v1270
          %v1337 = vpack.c.bf16 %v1277, %v1274
          %v1338 = vpack.c.bf16 %v1278, %v1275
          %v1339 = vpack.c.bf16 %v1279, %v1276
          %v1340 = vpack.c.bf16 %v1283, %v1280
          %v1341 = vpack.c.bf16 %v1284, %v1281
          %v1342 = vpack.c.bf16 %v1285, %v1282
          %v1343 = vpack.c.bf16 %v1289, %v1286
          %v1344 = vpack.c.bf16 %v1290, %v1287
          %v1345 = vpack.c.bf16 %v1291, %v1288
          %v1346 = vpack.c.bf16 %v1295, %v1292
          %v1347 = vpack.c.bf16 %v1296, %v1293
          %v1348 = vpack.c.bf16 %v1297, %v1294
          %v1349 = vpack.c.bf16 %v1301, %v1298
          %v1350 = vpack.c.bf16 %v1302, %v1299
          %v1351 = vpack.c.bf16 %v1303, %v1300
          %1352 = vst [vmem:[#allocation2] sm:$0xff] %v1304
          %1353 = vst [vmem:[#allocation2 + $0x8] sm:$0xff] %v1305
          %1354 = vst [vmem:[#allocation2 + $0x10] sm:$0xff] %v1306
          %1355 = vst [vmem:[#allocation2 + $0x18] sm:$0xff] %v1307
          %1356 = vst [vmem:[#allocation2 + $0x20] sm:$0xff] %v1308
          %1357 = vst [vmem:[#allocation2 + $0x28] sm:$0xff] %v1309
          %1358 = vst [vmem:[#allocation2 + $0x30] sm:$0xff] %v1310
          %1359 = vst [vmem:[#allocation2 + $0x38] sm:$0xff] %v1311
          %1360 = vst [vmem:[#allocation2 + $0x40] sm:$0xff] %v1312
          %1361 = vst [vmem:[#allocation2 + $0x48] sm:$0xff] %v1313
          %1362 = vst [vmem:[#allocation2 + $0x50] sm:$0xff] %v1314
          %1363 = vst [vmem:[#allocation2 + $0x58] sm:$0xff] %v1315
          %1364 = vst [vmem:[#allocation2 + $0x60] sm:$0xff] %v1316
          %1365 = vst [vmem:[#allocation2 + $0x68] sm:$0xff] %v1317
          %1366 = vst [vmem:[#allocation2 + $0x70] sm:$0xff] %v1318
          %1367 = vst [vmem:[#allocation2 + $0x78] sm:$0xff] %v1319
          %1368 = vst [vmem:[#allocation2 + $0x80] sm:$0xff] %v1320
          %1369 = vst [vmem:[#allocation2 + $0x88] sm:$0xff] %v1321
          %1370 = vst [vmem:[#allocation2 + $0x90] sm:$0xff] %v1322
          %1371 = vst [vmem:[#allocation2 + $0x98] sm:$0xff] %v1323
          %1372 = vst [vmem:[#allocation2 + $0xa0] sm:$0xff] %v1324
          %1373 = vst [vmem:[#allocation2 + $0xa8] sm:$0xff] %v1325
          %1374 = vst [vmem:[#allocation2 + $0xb0] sm:$0xff] %v1326
          %1375 = vst [vmem:[#allocation2 + $0xb8] sm:$0xff] %v1327
          %1376 = vst [vmem:[#allocation2 + $0xc0] sm:$0xff] %v1328
          %1377 = vst [vmem:[#allocation2 + $0xc8] sm:$0xff] %v1329
          %1378 = vst [vmem:[#allocation2 + $0xd0] sm:$0xff] %v1330
          %1379 = vst [vmem:[#allocation2 + $0xd8] sm:$0xff] %v1331
          %1380 = vst [vmem:[#allocation2 + $0xe0] sm:$0xff] %v1332
          %1381 = vst [vmem:[#allocation2 + $0xe8] sm:$0xff] %v1333
          %1382 = vst [vmem:[#allocation2 + $0xf0] sm:$0xff] %v1334
          %1383 = vst [vmem:[#allocation2 + $0xf8] sm:$0xff] %v1335
          %1384 = vst [vmem:[#allocation2 + $0x100] sm:$0xff] %v1336
          %1385 = vst [vmem:[#allocation2 + $0x108] sm:$0xff] %v1337
          %1386 = vst [vmem:[#allocation2 + $0x110] sm:$0xff] %v1338
          %1387 = vst [vmem:[#allocation2 + $0x118] sm:$0xff] %v1339
          %1388 = vst [vmem:[#allocation2 + $0x120] sm:$0xff] %v1340
          %1389 = vst [vmem:[#allocation2 + $0x128] sm:$0xff] %v1341
          %1390 = vst [vmem:[#allocation2 + $0x130] sm:$0xff] %v1342
          %1391 = vst [vmem:[#allocation2 + $0x138] sm:$0xff] %v1343
          %1392 = vst [vmem:[#allocation2 + $0x140] sm:$0xff] %v1344
          %1393 = vst [vmem:[#allocation2 + $0x148] sm:$0xff] %v1345
          %1394 = vst [vmem:[#allocation2 + $0x150] sm:$0xff] %v1346
          %1395 = vst [vmem:[#allocation2 + $0x158] sm:$0xff] %v1347
          %1396 = vst [vmem:[#allocation2 + $0x160] sm:$0xff] %v1348
          %1397 = vst [vmem:[#allocation2 + $0x168] sm:$0xff] %v1349
          %1398 = vst [vmem:[#allocation2 + $0x170] sm:$0xff] %v1350
          %1399 = vst [vmem:[#allocation2 + $0x178] sm:$0xff] %v1351
        $region52: #{tpu_custom_call.1} parent=39 // pred_fallthru
          _
        %v1400 = vld [vmem:[#allocation2] sm:$0xff]
        %v1401 = vld [vmem:[#allocation2 + $0x8] sm:$0xff]
        %v1402 = vld [vmem:[#allocation2 + $0x10] sm:$0xff]
        %v1403 = vld [vmem:[#allocation2 + $0x18] sm:$0xff]
        %v1404 = vld [vmem:[#allocation2 + $0x20] sm:$0xff]
        %v1405 = vld [vmem:[#allocation2 + $0x28] sm:$0xff]
        %v1406 = vld [vmem:[#allocation2 + $0x30] sm:$0xff]
        %v1407 = vld [vmem:[#allocation2 + $0x38] sm:$0xff]
        %v1408 = vld [vmem:[#allocation2 + $0x40] sm:$0xff]
        %v1409 = vld [vmem:[#allocation2 + $0x48] sm:$0xff]
        %v1410 = vld [vmem:[#allocation2 + $0x50] sm:$0xff]
        %v1411 = vld [vmem:[#allocation2 + $0x58] sm:$0xff]
        %v1412 = vld [vmem:[#allocation2 + $0x60] sm:$0xff]
        %v1413 = vld [vmem:[#allocation2 + $0x68] sm:$0xff]
        %v1414 = vld [vmem:[#allocation2 + $0x70] sm:$0xff]
        %v1415 = vld [vmem:[#allocation2 + $0x78] sm:$0xff]
        %v1416 = vld [vmem:[#allocation2 + $0x80] sm:$0xff]
        %v1417 = vld [vmem:[#allocation2 + $0x88] sm:$0xff]
        %v1418 = vld [vmem:[#allocation2 + $0x90] sm:$0xff]
        %v1419 = vld [vmem:[#allocation2 + $0x98] sm:$0xff]
        %v1420 = vld [vmem:[#allocation2 + $0xa0] sm:$0xff]
        %v1421 = vld [vmem:[#allocation2 + $0xa8] sm:$0xff]
        %v1422 = vld [vmem:[#allocation2 + $0xb0] sm:$0xff]
        %v1423 = vld [vmem:[#allocation2 + $0xb8] sm:$0xff]
        %v1424 = vld [vmem:[#allocation2 + $0xc0] sm:$0xff]
        %v1425 = vld [vmem:[#allocation2 + $0xc8] sm:$0xff]
        %v1426 = vld [vmem:[#allocation2 + $0xd0] sm:$0xff]
        %v1427 = vld [vmem:[#allocation2 + $0xd8] sm:$0xff]
        %v1428 = vld [vmem:[#allocation2 + $0xe0] sm:$0xff]
        %v1429 = vld [vmem:[#allocation2 + $0xe8] sm:$0xff]
        %v1430 = vld [vmem:[#allocation2 + $0xf0] sm:$0xff]
        %v1431 = vld [vmem:[#allocation2 + $0xf8] sm:$0xff]
        %v1432 = vld [vmem:[#allocation2 + $0x100] sm:$0xff]
        %v1433 = vld [vmem:[#allocation2 + $0x108] sm:$0xff]
        %v1434 = vld [vmem:[#allocation2 + $0x110] sm:$0xff]
        %v1435 = vld [vmem:[#allocation2 + $0x118] sm:$0xff]
        %v1436 = vld [vmem:[#allocation2 + $0x120] sm:$0xff]
        %v1437 = vld [vmem:[#allocation2 + $0x128] sm:$0xff]
        %v1438 = vld [vmem:[#allocation2 + $0x130] sm:$0xff]
        %v1439 = vld [vmem:[#allocation2 + $0x138] sm:$0xff]
        %v1440 = vld [vmem:[#allocation2 + $0x140] sm:$0xff]
        %v1441 = vld [vmem:[#allocation2 + $0x148] sm:$0xff]
        %v1442 = vld [vmem:[#allocation2 + $0x150] sm:$0xff]
        %v1443 = vld [vmem:[#allocation2 + $0x158] sm:$0xff]
        %v1444 = vld [vmem:[#allocation2 + $0x160] sm:$0xff]
        %v1445 = vld [vmem:[#allocation2 + $0x168] sm:$0xff]
        %v1446 = vld [vmem:[#allocation2 + $0x170] sm:$0xff]
        %v1447 = vld [vmem:[#allocation2 + $0x178] sm:$0xff]
        %v1448 = vld [vmem:[#allocation6] sm:$0xff]
        %v1449 = vld [vmem:[#allocation6 + $0x8] sm:$0xf]
        %v1450 = vld [vmem:[#allocation6 + $0xc] sm:$0xff]
        %v1451 = vld [vmem:[#allocation6 + $0x14] sm:$0xf]
        %v1452 = vld [vmem:[#allocation6 + $0x18] sm:$0xff]
        %v1453 = vld [vmem:[#allocation6 + $0x20] sm:$0xf]
        %v1454 = vld [vmem:[#allocation6 + $0x24] sm:$0xff]
        %v1455 = vld [vmem:[#allocation6 + $0x2c] sm:$0xf]
        %v1456 = vld [vmem:[#allocation6 + $0x30] sm:$0xff]
        %v1457 = vld [vmem:[#allocation6 + $0x38] sm:$0xf]
        %v1458 = vld [vmem:[#allocation6 + $0x3c] sm:$0xff]
        %v1459 = vld [vmem:[#allocation6 + $0x44] sm:$0xf]
        %v1460 = vld [vmem:[#allocation6 + $0x48] sm:$0xff]
        %v1461 = vld [vmem:[#allocation6 + $0x50] sm:$0xf]
        %v1462 = vld [vmem:[#allocation6 + $0x54] sm:$0xff]
        %v1463 = vld [vmem:[#allocation6 + $0x5c] sm:$0xf]
        %v1464 = vld [vmem:[#allocation6 + $0x60] sm:$0xff]
        %v1465 = vld [vmem:[#allocation6 + $0x68] sm:$0xf]
        %v1466 = vld [vmem:[#allocation6 + $0x6c] sm:$0xff]
        %v1467 = vld [vmem:[#allocation6 + $0x74] sm:$0xf]
        %v1468 = vld [vmem:[#allocation6 + $0x78] sm:$0xff]
        %v1469 = vld [vmem:[#allocation6 + $0x80] sm:$0xf]
        %v1470 = vld [vmem:[#allocation6 + $0x84] sm:$0xff]
        %v1471 = vld [vmem:[#allocation6 + $0x8c] sm:$0xf]
        %v1472 = vld [vmem:[#allocation6 + $0x90] sm:$0xff]
        %v1473 = vld [vmem:[#allocation6 + $0x98] sm:$0xf]
        %v1474 = vld [vmem:[#allocation6 + $0x9c] sm:$0xff]
        %v1475 = vld [vmem:[#allocation6 + $0xa4] sm:$0xf]
        %v1476 = vld [vmem:[#allocation6 + $0xa8] sm:$0xff]
        %v1477 = vld [vmem:[#allocation6 + $0xb0] sm:$0xf]
        %v1478 = vld [vmem:[#allocation6 + $0xb4] sm:$0xff]
        %v1479 = vld [vmem:[#allocation6 + $0xbc] sm:$0xf]
        %v1480 = vld [vmem:[#allocation6 + $0xc0] sm:$0xff]
        %v1481 = vld [vmem:[#allocation6 + $0xc8] sm:$0xf]
        %v1482 = vld [vmem:[#allocation6 + $0xcc] sm:$0xff]
        %v1483 = vld [vmem:[#allocation6 + $0xd4] sm:$0xf]
        %v1484 = vld [vmem:[#allocation6 + $0xd8] sm:$0xff]
        %v1485 = vld [vmem:[#allocation6 + $0xe0] sm:$0xf]
        %v1486 = vld [vmem:[#allocation6 + $0xe4] sm:$0xff]
        %v1487 = vld [vmem:[#allocation6 + $0xec] sm:$0xf]
        %v1488 = vld [vmem:[#allocation6 + $0xf0] sm:$0xff]
        %v1489 = vld [vmem:[#allocation6 + $0xf8] sm:$0xf]
        %v1490 = vld [vmem:[#allocation6 + $0xfc] sm:$0xff]
        %v1491 = vld [vmem:[#allocation6 + $0x104] sm:$0xf]
        %v1492 = vld [vmem:[#allocation6 + $0x108] sm:$0xff]
        %v1493 = vld [vmem:[#allocation6 + $0x110] sm:$0xf]
        %v1494 = vld [vmem:[#allocation6 + $0x114] sm:$0xff]
        %v1495 = vld [vmem:[#allocation6 + $0x11c] sm:$0xf]
        %v1496 = vld [vmem:[#allocation6 + $0x120] sm:$0xff]
        %v1497 = vld [vmem:[#allocation6 + $0x128] sm:$0xf]
        %v1498 = vld [vmem:[#allocation6 + $0x12c] sm:$0xff]
        %v1499 = vld [vmem:[#allocation6 + $0x134] sm:$0xf]
        %v1500 = vld [vmem:[#allocation6 + $0x138] sm:$0xff]
        %v1501 = vld [vmem:[#allocation6 + $0x140] sm:$0xf]
        %v1502 = vld [vmem:[#allocation6 + $0x144] sm:$0xff]
        %v1503 = vld [vmem:[#allocation6 + $0x14c] sm:$0xf]
        %v1504 = vld [vmem:[#allocation6 + $0x150] sm:$0xff]
        %v1505 = vld [vmem:[#allocation6 + $0x158] sm:$0xf]
        %v1506 = vld [vmem:[#allocation6 + $0x15c] sm:$0xff]
        %v1507 = vld [vmem:[#allocation6 + $0x164] sm:$0xf]
        %v1508 = vld [vmem:[#allocation6 + $0x168] sm:$0xff]
        %v1509 = vld [vmem:[#allocation6 + $0x170] sm:$0xf]
        %v1510 = vld [vmem:[#allocation6 + $0x174] sm:$0xff]
        %v1511 = vld [vmem:[#allocation6 + $0x17c] sm:$0xf]
        %v1512 = vld [vmem:[#allocation6 + $0x180] sm:$0xff]
        %v1513 = vld [vmem:[#allocation6 + $0x188] sm:$0xf]
        %v1514 = vld [vmem:[#allocation6 + $0x18c] sm:$0xff]
        %v1515 = vld [vmem:[#allocation6 + $0x194] sm:$0xf]
        %v1516 = vld [vmem:[#allocation6 + $0x198] sm:$0xff]
        %v1517 = vld [vmem:[#allocation6 + $0x1a0] sm:$0xf]
        %v1518 = vld [vmem:[#allocation6 + $0x1a4] sm:$0xff]
        %v1519 = vld [vmem:[#allocation6 + $0x1ac] sm:$0xf]
        %v1520 = vld [vmem:[#allocation6 + $0x1b0] sm:$0xff]
        %v1521 = vld [vmem:[#allocation6 + $0x1b8] sm:$0xf]
        %v1522 = vld [vmem:[#allocation6 + $0x1bc] sm:$0xff]
        %v1523 = vld [vmem:[#allocation6 + $0x1c4] sm:$0xf]
        %v1524 = vld [vmem:[#allocation6 + $0x1c8] sm:$0xff]
        %v1525 = vld [vmem:[#allocation6 + $0x1d0] sm:$0xf]
        %v1526 = vld [vmem:[#allocation6 + $0x1d4] sm:$0xff]
        %v1527 = vld [vmem:[#allocation6 + $0x1dc] sm:$0xf]
        %v1528 = vld [vmem:[#allocation6 + $0x1e0] sm:$0xff]
        %v1529 = vld [vmem:[#allocation6 + $0x1e8] sm:$0xf]
        %v1530 = vld [vmem:[#allocation6 + $0x1ec] sm:$0xff]
        %v1531 = vld [vmem:[#allocation6 + $0x1f4] sm:$0xf]
        %v1532 = vld [vmem:[#allocation6 + $0x1f8] sm:$0xff]
        %v1533 = vld [vmem:[#allocation6 + $0x200] sm:$0xf]
        %v1534 = vld [vmem:[#allocation6 + $0x204] sm:$0xff]
        %v1535 = vld [vmem:[#allocation6 + $0x20c] sm:$0xf]
        %v1536 = vld [vmem:[#allocation6 + $0x210] sm:$0xff]
        %v1537 = vld [vmem:[#allocation6 + $0x218] sm:$0xf]
        %v1538 = vld [vmem:[#allocation6 + $0x21c] sm:$0xff]
        %v1539 = vld [vmem:[#allocation6 + $0x224] sm:$0xf]
        %v1540 = vld [vmem:[#allocation6 + $0x228] sm:$0xff]
        %v1541 = vld [vmem:[#allocation6 + $0x230] sm:$0xf]
        %v1542 = vld [vmem:[#allocation6 + $0x234] sm:$0xff]
        %v1543 = vld [vmem:[#allocation6 + $0x23c] sm:$0xf]
        %v1544 = vld [vmem:[%s300] sm:$0x7]
        %v1546 = vlaneseq
        %v1547 = vshrl.u32 %v1546, 7
        %v1548 = vsub.s32 0, %v1547
        %v1549 = vrot.slane %v1544, %v1548
        %v1550 = vlaneseq
        %v1551 = vshrl.u32 %v1550, 7
        %v1552 = vsub.s32 1, %v1551
        %v1553 = vrot.slane %v1544, %v1552
        %v1554 = vlaneseq
        %v1555 = vshrl.u32 %v1554, 7
        %v1556 = vsub.s32 2, %v1555
        %v1557 = vrot.slane %v1544, %v1556
        %v1657 = vunpack.c.l.b16 %v1448
        %v1658 = vunpack.c.h.b16 %v1448
        %v1659 = vunpack.c.l.b16 %v1449
        %v1660 = vunpack.c.l.b16 %v1450
        %v1661 = vunpack.c.h.b16 %v1450
        %v1662 = vunpack.c.l.b16 %v1451
        %v1663 = vunpack.c.l.b16 %v1452
        %v1664 = vunpack.c.h.b16 %v1452
        %v1665 = vunpack.c.l.b16 %v1453
        %v1666 = vunpack.c.l.b16 %v1454
        %v1667 = vunpack.c.h.b16 %v1454
        %v1668 = vunpack.c.l.b16 %v1455
        %v1669 = vunpack.c.l.b16 %v1456
        %v1670 = vunpack.c.h.b16 %v1456
        %v1671 = vunpack.c.l.b16 %v1457
        %v1672 = vunpack.c.l.b16 %v1458
        %v1673 = vunpack.c.h.b16 %v1458
        %v1674 = vunpack.c.l.b16 %v1459
        %v1675 = vunpack.c.l.b16 %v1460
        %v1676 = vunpack.c.h.b16 %v1460
        %v1677 = vunpack.c.l.b16 %v1461
        %v1678 = vunpack.c.l.b16 %v1462
        %v1679 = vunpack.c.h.b16 %v1462
        %v1680 = vunpack.c.l.b16 %v1463
        %v1681 = vunpack.c.l.b16 %v1464
        %v1682 = vunpack.c.h.b16 %v1464
        %v1683 = vunpack.c.l.b16 %v1465
        %v1684 = vunpack.c.l.b16 %v1466
        %v1685 = vunpack.c.h.b16 %v1466
        %v1686 = vunpack.c.l.b16 %v1467
        %v1687 = vunpack.c.l.b16 %v1468
        %v1688 = vunpack.c.h.b16 %v1468
        %v1689 = vunpack.c.l.b16 %v1469
        %v1690 = vunpack.c.l.b16 %v1470
        %v1691 = vunpack.c.h.b16 %v1470
        %v1692 = vunpack.c.l.b16 %v1471
        %v1693 = vunpack.c.l.b16 %v1472
        %v1694 = vunpack.c.h.b16 %v1472
        %v1695 = vunpack.c.l.b16 %v1473
        %v1696 = vunpack.c.l.b16 %v1474
        %v1697 = vunpack.c.h.b16 %v1474
        %v1698 = vunpack.c.l.b16 %v1475
        %v1699 = vunpack.c.l.b16 %v1476
        %v1700 = vunpack.c.h.b16 %v1476
        %v1701 = vunpack.c.l.b16 %v1477
        %v1702 = vunpack.c.l.b16 %v1478
        %v1703 = vunpack.c.h.b16 %v1478
        %v1704 = vunpack.c.l.b16 %v1479
        %v1705 = vunpack.c.l.b16 %v1480
        %v1706 = vunpack.c.h.b16 %v1480
        %v1707 = vunpack.c.l.b16 %v1481
        %v1708 = vunpack.c.l.b16 %v1482
        %v1709 = vunpack.c.h.b16 %v1482
        %v1710 = vunpack.c.l.b16 %v1483
        %v1711 = vunpack.c.l.b16 %v1484
        %v1712 = vunpack.c.h.b16 %v1484
        %v1713 = vunpack.c.l.b16 %v1485
        %v1714 = vunpack.c.l.b16 %v1486
        %v1715 = vunpack.c.h.b16 %v1486
        %v1716 = vunpack.c.l.b16 %v1487
        %v1717 = vunpack.c.l.b16 %v1488
        %v1718 = vunpack.c.h.b16 %v1488
        %v1719 = vunpack.c.l.b16 %v1489
        %v1720 = vunpack.c.l.b16 %v1490
        %v1721 = vunpack.c.h.b16 %v1490
        %v1722 = vunpack.c.l.b16 %v1491
        %v1723 = vunpack.c.l.b16 %v1492
        %v1724 = vunpack.c.h.b16 %v1492
        %v1725 = vunpack.c.l.b16 %v1493
        %v1726 = vunpack.c.l.b16 %v1494
        %v1727 = vunpack.c.h.b16 %v1494
        %v1728 = vunpack.c.l.b16 %v1495
        %v1729 = vunpack.c.l.b16 %v1496
        %v1730 = vunpack.c.h.b16 %v1496
        %v1731 = vunpack.c.l.b16 %v1497
        %v1732 = vunpack.c.l.b16 %v1498
        %v1733 = vunpack.c.h.b16 %v1498
        %v1734 = vunpack.c.l.b16 %v1499
        %v1735 = vunpack.c.l.b16 %v1500
        %v1736 = vunpack.c.h.b16 %v1500
        %v1737 = vunpack.c.l.b16 %v1501
        %v1738 = vunpack.c.l.b16 %v1502
        %v1739 = vunpack.c.h.b16 %v1502
        %v1740 = vunpack.c.l.b16 %v1503
        %v1741 = vunpack.c.l.b16 %v1504
        %v1742 = vunpack.c.h.b16 %v1504
        %v1743 = vunpack.c.l.b16 %v1505
        %v1744 = vunpack.c.l.b16 %v1506
        %v1745 = vunpack.c.h.b16 %v1506
        %v1746 = vunpack.c.l.b16 %v1507
        %v1747 = vunpack.c.l.b16 %v1508
        %v1748 = vunpack.c.h.b16 %v1508
        %v1749 = vunpack.c.l.b16 %v1509
        %v1750 = vunpack.c.l.b16 %v1510
        %v1751 = vunpack.c.h.b16 %v1510
        %v1752 = vunpack.c.l.b16 %v1511
        %v1753 = vunpack.c.l.b16 %v1512
        %v1754 = vunpack.c.h.b16 %v1512
        %v1755 = vunpack.c.l.b16 %v1513
        %v1756 = vunpack.c.l.b16 %v1514
        %v1757 = vunpack.c.h.b16 %v1514
        %v1758 = vunpack.c.l.b16 %v1515
        %v1759 = vunpack.c.l.b16 %v1516
        %v1760 = vunpack.c.h.b16 %v1516
        %v1761 = vunpack.c.l.b16 %v1517
        %v1762 = vunpack.c.l.b16 %v1518
        %v1763 = vunpack.c.h.b16 %v1518
        %v1764 = vunpack.c.l.b16 %v1519
        %v1765 = vunpack.c.l.b16 %v1520
        %v1766 = vunpack.c.h.b16 %v1520
        %v1767 = vunpack.c.l.b16 %v1521
        %v1768 = vunpack.c.l.b16 %v1522
        %v1769 = vunpack.c.h.b16 %v1522
        %v1770 = vunpack.c.l.b16 %v1523
        %v1771 = vunpack.c.l.b16 %v1524
        %v1772 = vunpack.c.h.b16 %v1524
        %v1773 = vunpack.c.l.b16 %v1525
        %v1774 = vunpack.c.l.b16 %v1526
        %v1775 = vunpack.c.h.b16 %v1526
        %v1776 = vunpack.c.l.b16 %v1527
        %v1777 = vunpack.c.l.b16 %v1528
        %v1778 = vunpack.c.h.b16 %v1528
        %v1779 = vunpack.c.l.b16 %v1529
        %v1780 = vunpack.c.l.b16 %v1530
        %v1781 = vunpack.c.h.b16 %v1530
        %v1782 = vunpack.c.l.b16 %v1531
        %v1783 = vunpack.c.l.b16 %v1532
        %v1784 = vunpack.c.h.b16 %v1532
        %v1785 = vunpack.c.l.b16 %v1533
        %v1786 = vunpack.c.l.b16 %v1534
        %v1787 = vunpack.c.h.b16 %v1534
        %v1788 = vunpack.c.l.b16 %v1535
        %v1789 = vunpack.c.l.b16 %v1536
        %v1790 = vunpack.c.h.b16 %v1536
        %v1791 = vunpack.c.l.b16 %v1537
        %v1792 = vunpack.c.l.b16 %v1538
        %v1793 = vunpack.c.h.b16 %v1538
        %v1794 = vunpack.c.l.b16 %v1539
        %v1795 = vunpack.c.l.b16 %v1540
        %v1796 = vunpack.c.h.b16 %v1540
        %v1797 = vunpack.c.l.b16 %v1541
        %v1798 = vunpack.c.l.b16 %v1542
        %v1799 = vunpack.c.h.b16 %v1542
        %v1800 = vunpack.c.l.b16 %v1543
        %v1801 = vpack.c.b16 %v1660, %v1657
        %v1802 = vpack.c.b16 %v1661, %v1658
        %v1803 = vpack.c.b16 %v1662, %v1659
        %v1804 = vpack.c.b16 %v1666, %v1663
        %v1805 = vpack.c.b16 %v1667, %v1664
        %v1806 = vpack.c.b16 %v1668, %v1665
        %v1807 = vpack.c.b16 %v1672, %v1669
        %v1808 = vpack.c.b16 %v1673, %v1670
        %v1809 = vpack.c.b16 %v1674, %v1671
        %v1810 = vpack.c.b16 %v1678, %v1675
        %v1811 = vpack.c.b16 %v1679, %v1676
        %v1812 = vpack.c.b16 %v1680, %v1677
        %v1813 = vpack.c.b16 %v1684, %v1681
        %v1814 = vpack.c.b16 %v1685, %v1682
        %v1815 = vpack.c.b16 %v1686, %v1683
        %v1816 = vpack.c.b16 %v1690, %v1687
        %v1817 = vpack.c.b16 %v1691, %v1688
        %v1818 = vpack.c.b16 %v1692, %v1689
        %v1819 = vpack.c.b16 %v1696, %v1693
        %v1820 = vpack.c.b16 %v1697, %v1694
        %v1821 = vpack.c.b16 %v1698, %v1695
        %v1822 = vpack.c.b16 %v1702, %v1699
        %v1823 = vpack.c.b16 %v1703, %v1700
        %v1824 = vpack.c.b16 %v1704, %v1701
        %v1825 = vpack.c.b16 %v1708, %v1705
        %v1826 = vpack.c.b16 %v1709, %v1706
        %v1827 = vpack.c.b16 %v1710, %v1707
        %v1828 = vpack.c.b16 %v1714, %v1711
        %v1829 = vpack.c.b16 %v1715, %v1712
        %v1830 = vpack.c.b16 %v1716, %v1713
        %v1831 = vpack.c.b16 %v1720, %v1717
        %v1832 = vpack.c.b16 %v1721, %v1718
        %v1833 = vpack.c.b16 %v1722, %v1719
        %v1834 = vpack.c.b16 %v1726, %v1723
        %v1835 = vpack.c.b16 %v1727, %v1724
        %v1836 = vpack.c.b16 %v1728, %v1725
        %v1837 = vpack.c.b16 %v1732, %v1729
        %v1838 = vpack.c.b16 %v1733, %v1730
        %v1839 = vpack.c.b16 %v1734, %v1731
        %v1840 = vpack.c.b16 %v1738, %v1735
        %v1841 = vpack.c.b16 %v1739, %v1736
        %v1842 = vpack.c.b16 %v1740, %v1737
        %v1843 = vpack.c.b16 %v1744, %v1741
        %v1844 = vpack.c.b16 %v1745, %v1742
        %v1845 = vpack.c.b16 %v1746, %v1743
        %v1846 = vpack.c.b16 %v1750, %v1747
        %v1847 = vpack.c.b16 %v1751, %v1748
        %v1848 = vpack.c.b16 %v1752, %v1749
        %v1849 = vpack.c.b16 %v1756, %v1753
        %v1850 = vpack.c.b16 %v1757, %v1754
        %v1851 = vpack.c.b16 %v1758, %v1755
        %v1852 = vpack.c.b16 %v1762, %v1759
        %v1853 = vpack.c.b16 %v1763, %v1760
        %v1854 = vpack.c.b16 %v1764, %v1761
        %v1855 = vpack.c.b16 %v1768, %v1765
        %v1856 = vpack.c.b16 %v1769, %v1766
        %v1857 = vpack.c.b16 %v1770, %v1767
        %v1858 = vpack.c.b16 %v1774, %v1771
        %v1859 = vpack.c.b16 %v1775, %v1772
        %v1860 = vpack.c.b16 %v1776, %v1773
        %v1861 = vpack.c.b16 %v1780, %v1777
        %v1862 = vpack.c.b16 %v1781, %v1778
        %v1863 = vpack.c.b16 %v1782, %v1779
        %v1864 = vpack.c.b16 %v1786, %v1783
        %v1865 = vpack.c.b16 %v1787, %v1784
        %v1866 = vpack.c.b16 %v1788, %v1785
        %v1867 = vpack.c.b16 %v1792, %v1789
        %v1868 = vpack.c.b16 %v1793, %v1790
        %v1869 = vpack.c.b16 %v1794, %v1791
        %v1870 = vpack.c.b16 %v1798, %v1795
        %v1871 = vpack.c.b16 %v1799, %v1796
        %v1872 = vpack.c.b16 %v1800, %v1797
        %1945 = vmatprep.subr.bf16.mxu0 %v1802
        %1946 = vmatpush1.bf16.msra.mxu0 %v1801
        %1947 = vmatprep.subr.bf16.mxu0 %v1805
        %1948 = vmatpush1.bf16.msra.mxu0 %v1804
        %1949 = vmatprep.subr.bf16.mxu0 %v1808
        %1950 = vmatpush1.bf16.msra.mxu0 %v1807
        %1951 = vmatprep.subr.bf16.mxu0 %v1811
        %1952 = vmatpush1.bf16.msra.mxu0 %v1810
        %1953 = vmatprep.subr.bf16.mxu0 %v1814
        %1954 = vmatpush1.bf16.msra.mxu0 %v1813
        %1955 = vmatprep.subr.bf16.mxu0 %v1817
        %1956 = vmatpush1.bf16.msra.mxu0 %v1816
        %1957 = vmatprep.subr.bf16.mxu0 %v1820
        %1958 = vmatpush1.bf16.msra.mxu0 %v1819
        %1959 = vmatprep.subr.bf16.mxu0 %v1823
        %1960 = vmatpush1.bf16.msra.mxu0 %v1822
        %1961 = vmatprep.subr.bf16.mxu0 %v1826
        %1962 = vmatpush1.bf16.msra.mxu0 %v1825
        %1963 = vmatprep.subr.bf16.mxu0 %v1829
        %1964 = vmatpush1.bf16.msra.mxu0 %v1828
        %1965 = vmatprep.subr.bf16.mxu0 %v1832
        %1966 = vmatpush1.bf16.msra.mxu0 %v1831
        %1967 = vmatprep.subr.bf16.mxu0 %v1835
        %1968 = vmatpush1.bf16.msra.mxu0 %v1834
        %1969 = vmatprep.subr.bf16.mxu0 %v1838
        %1970 = vmatpush1.bf16.msra.mxu0 %v1837
        %1971 = vmatprep.subr.bf16.mxu0 %v1841
        %1972 = vmatpush1.bf16.msra.mxu0 %v1840
        %1973 = vmatprep.subr.bf16.mxu0 %v1844
        %1974 = vmatpush1.bf16.msra.mxu0 %v1843
        %1975 = vmatprep.subr.bf16.mxu0 %v1847
        %1976 = vmatpush1.bf16.msra.mxu0 %v1846
        %1977 = vmatprep.mubr.bf16.mxu0 %v1401
        %1978 = vmatmul.mubr.bf16.gmra.mrb[0].mxu0 %v1400
        %v1979 = vpop.f32.mrb[0].mxu0
        %v1980 = vadd.f32 %v1549, %v1979
        %v1981 = vpop.f32.mrb[0].mxu0
        %v1982 = vadd.f32 %v1553, %v1981
        %v1983 = vpop.f32.mrb[0].mxu0
        %v1984 = vadd.f32 %v1549, %v1983
        %v1985 = vpop.f32.mrb[0].mxu0
        %v1986 = vadd.f32 %v1553, %v1985
        %1987 = vmatprep.mubr.bf16.mxu0 %v1404
        %1988 = vmatmul.mubr.bf16.gmra.mrb[0].mxu0 %v1403
        %v1989 = vpop.f32.mrb[0].mxu0
        %v1990 = vadd.f32 %v1549, %v1989
        %v1991 = vpop.f32.mrb[0].mxu0
        %v1992 = vadd.f32 %v1553, %v1991
        %v1993 = vpop.f32.mrb[0].mxu0
        %v1994 = vadd.f32 %v1549, %v1993
        %v1995 = vpop.f32.mrb[0].mxu0
        %v1996 = vadd.f32 %v1553, %v1995
        %1997 = vmatprep.mubr.bf16.mxu0 %v1407
        %1998 = vmatmul.mubr.bf16.gmra.mrb[0].mxu0 %v1406
        %v1999 = vpop.f32.mrb[0].mxu0
        %v2000 = vadd.f32 %v1549, %v1999
        %v2001 = vpop.f32.mrb[0].mxu0
        %v2002 = vadd.f32 %v1553, %v2001
        %v2003 = vpop.f32.mrb[0].mxu0
        %v2004 = vadd.f32 %v1549, %v2003
        %v2005 = vpop.f32.mrb[0].mxu0
        %v2006 = vadd.f32 %v1553, %v2005
        %2007 = vmatprep.mubr.bf16.mxu0 %v1410
        %2008 = vmatmul.mubr.bf16.gmra.mrb[0].mxu0 %v1409
        %v2009 = vpop.f32.mrb[0].mxu0
        %v2010 = vadd.f32 %v1549, %v2009
        %v2011 = vpop.f32.mrb[0].mxu0
        %v2012 = vadd.f32 %v1553, %v2011
        %v2013 = vpop.f32.mrb[0].mxu0
        %v2014 = vadd.f32 %v1549, %v2013
        %v2015 = vpop.f32.mrb[0].mxu0
        %v2016 = vadd.f32 %v1553, %v2015
        %2017 = vmatprep.mubr.bf16.mxu0 %v1413
        %2018 = vmatmul.mubr.bf16.gmra.mrb[0].mxu0 %v1412
        %v2019 = vpop.f32.mrb[0].mxu0
        %v2020 = vadd.f32 %v1549, %v2019
        %v2021 = vpop.f32.mrb[0].mxu0
        %v2022 = vadd.f32 %v1553, %v2021
        %v2023 = vpop.f32.mrb[0].mxu0
        %v2024 = vadd.f32 %v1549, %v2023
        %v2025 = vpop.f32.mrb[0].mxu0
        %v2026 = vadd.f32 %v1553, %v2025
        %2027 = vmatprep.mubr.bf16.mxu0 %v1416
        %2028 = vmatmul.mubr.bf16.gmra.mrb[0].mxu0 %v1415
        %v2029 = vpop.f32.mrb[0].mxu0
        %v2030 = vadd.f32 %v1549, %v2029
        %v2031 = vpop.f32.mrb[0].mxu0
        %v2032 = vadd.f32 %v1553, %v2031
        %v2033 = vpop.f32.mrb[0].mxu0
        %v2034 = vadd.f32 %v1549, %v2033
        %v2035 = vpop.f32.mrb[0].mxu0
        %v2036 = vadd.f32 %v1553, %v2035
        %2037 = vmatprep.mubr.bf16.mxu0 %v1419
        %2038 = vmatmul.mubr.bf16.gmra.mrb[0].mxu0 %v1418
        %v2039 = vpop.f32.mrb[0].mxu0
        %v2040 = vadd.f32 %v1549, %v2039
        %v2041 = vpop.f32.mrb[0].mxu0
        %v2042 = vadd.f32 %v1553, %v2041
        %v2043 = vpop.f32.mrb[0].mxu0
        %v2044 = vadd.f32 %v1549, %v2043
        %v2045 = vpop.f32.mrb[0].mxu0
        %v2046 = vadd.f32 %v1553, %v2045
        %2047 = vmatprep.mubr.bf16.mxu0 %v1422
        %2048 = vmatmul.mubr.bf16.gmra.mrb[0].mxu0 %v1421
        %v2049 = vpop.f32.mrb[0].mxu0
        %v2050 = vadd.f32 %v1549, %v2049
        %v2051 = vpop.f32.mrb[0].mxu0
        %v2052 = vadd.f32 %v1553, %v2051
        %v2053 = vpop.f32.mrb[0].mxu0
        %v2054 = vadd.f32 %v1549, %v2053
        %v2055 = vpop.f32.mrb[0].mxu0
        %v2056 = vadd.f32 %v1553, %v2055
        %2057 = vmatprep.mubr.bf16.mxu0 %v1425
        %2058 = vmatmul.mubr.bf16.gmra.mrb[0].mxu0 %v1424
        %v2059 = vpop.f32.mrb[0].mxu0
        %v2060 = vadd.f32 %v1549, %v2059
        %v2061 = vpop.f32.mrb[0].mxu0
        %v2062 = vadd.f32 %v1553, %v2061
        %v2063 = vpop.f32.mrb[0].mxu0
        %v2064 = vadd.f32 %v1549, %v2063
        %v2065 = vpop.f32.mrb[0].mxu0
        %v2066 = vadd.f32 %v1553, %v2065
        %2067 = vmatprep.mubr.bf16.mxu0 %v1428
        %2068 = vmatmul.mubr.bf16.gmra.mrb[0].mxu0 %v1427
        %v2069 = vpop.f32.mrb[0].mxu0
        %v2070 = vadd.f32 %v1549, %v2069
        %v2071 = vpop.f32.mrb[0].mxu0
        %v2072 = vadd.f32 %v1553, %v2071
        %v2073 = vpop.f32.mrb[0].mxu0
        %v2074 = vadd.f32 %v1549, %v2073
        %v2075 = vpop.f32.mrb[0].mxu0
        %v2076 = vadd.f32 %v1553, %v2075
        %2077 = vmatprep.mubr.bf16.mxu0 %v1431
        %2078 = vmatmul.mubr.bf16.gmra.mrb[0].mxu0 %v1430
        %v2079 = vpop.f32.mrb[0].mxu0
        %v2080 = vadd.f32 %v1549, %v2079
        %v2081 = vpop.f32.mrb[0].mxu0
        %v2082 = vadd.f32 %v1553, %v2081
        %v2083 = vpop.f32.mrb[0].mxu0
        %v2084 = vadd.f32 %v1549, %v2083
        %v2085 = vpop.f32.mrb[0].mxu0
        %v2086 = vadd.f32 %v1553, %v2085
        %2087 = vmatprep.mubr.bf16.mxu0 %v1434
        %2088 = vmatmul.mubr.bf16.gmra.mrb[0].mxu0 %v1433
        %v2089 = vpop.f32.mrb[0].mxu0
        %v2090 = vadd.f32 %v1549, %v2089
        %v2091 = vpop.f32.mrb[0].mxu0
        %v2092 = vadd.f32 %v1553, %v2091
        %v2093 = vpop.f32.mrb[0].mxu0
        %v2094 = vadd.f32 %v1549, %v2093
        %v2095 = vpop.f32.mrb[0].mxu0
        %v2096 = vadd.f32 %v1553, %v2095
        %2097 = vmatprep.mubr.bf16.mxu0 %v1437
        %2098 = vmatmul.mubr.bf16.gmra.mrb[0].mxu0 %v1436
        %v2099 = vpop.f32.mrb[0].mxu0
        %v2100 = vadd.f32 %v1549, %v2099
        %v2101 = vpop.f32.mrb[0].mxu0
        %v2102 = vadd.f32 %v1553, %v2101
        %v2103 = vpop.f32.mrb[0].mxu0
        %v2104 = vadd.f32 %v1549, %v2103
        %v2105 = vpop.f32.mrb[0].mxu0
        %v2106 = vadd.f32 %v1553, %v2105
        %2107 = vmatprep.mubr.bf16.mxu0 %v1440
        %2108 = vmatmul.mubr.bf16.gmra.mrb[0].mxu0 %v1439
        %v2109 = vpop.f32.mrb[0].mxu0
        %v2110 = vadd.f32 %v1549, %v2109
        %v2111 = vpop.f32.mrb[0].mxu0
        %v2112 = vadd.f32 %v1553, %v2111
        %v2113 = vpop.f32.mrb[0].mxu0
        %v2114 = vadd.f32 %v1549, %v2113
        %v2115 = vpop.f32.mrb[0].mxu0
        %v2116 = vadd.f32 %v1553, %v2115
        %2117 = vmatprep.mubr.bf16.mxu0 %v1443
        %2118 = vmatmul.mubr.bf16.gmra.mrb[0].mxu0 %v1442
        %v2119 = vpop.f32.mrb[0].mxu0
        %v2120 = vadd.f32 %v1549, %v2119
        %v2121 = vpop.f32.mrb[0].mxu0
        %v2122 = vadd.f32 %v1553, %v2121
        %v2123 = vpop.f32.mrb[0].mxu0
        %v2124 = vadd.f32 %v1549, %v2123
        %v2125 = vpop.f32.mrb[0].mxu0
        %v2126 = vadd.f32 %v1553, %v2125
        %2127 = vmatprep.mubr.bf16.mxu0 %v1446
        %2128 = vmatmul.mubr.bf16.gmra.mrb[0].mxu0 %v1445
        %v2129 = vpop.f32.mrb[0].mxu0
        %v2130 = vadd.f32 %v1549, %v2129
        %v2131 = vpop.f32.mrb[0].mxu0
        %v2132 = vadd.f32 %v1553, %v2131
        %v2133 = vpop.f32.mrb[0].mxu0
        %v2134 = vadd.f32 %v1549, %v2133
        %v2135 = vpop.f32.mrb[0].mxu0
        %v2136 = vadd.f32 %v1553, %v2135
        %2137 = vdwg.mxu0
        %2138 = vmatprep.subr.bf16.mxu0 %v1850
        %2139 = vmatpush1.bf16.msra.mxu0 %v1849
        %2140 = vmatprep.subr.bf16.mxu0 %v1853
        %2141 = vmatpush1.bf16.msra.mxu0 %v1852
        %2142 = vmatprep.subr.bf16.mxu0 %v1856
        %2143 = vmatpush1.bf16.msra.mxu0 %v1855
        %2144 = vmatprep.subr.bf16.mxu0 %v1859
        %2145 = vmatpush1.bf16.msra.mxu0 %v1858
        %2146 = vmatprep.subr.bf16.mxu0 %v1862
        %2147 = vmatpush1.bf16.msra.mxu0 %v1861
        %2148 = vmatprep.subr.bf16.mxu0 %v1865
        %2149 = vmatpush1.bf16.msra.mxu0 %v1864
        %2150 = vmatprep.subr.bf16.mxu0 %v1868
        %2151 = vmatpush1.bf16.msra.mxu0 %v1867
        %2152 = vmatprep.subr.bf16.mxu0 %v1871
        %2153 = vmatpush1.bf16.msra.mxu0 %v1870
        %2154 = vmatprep.subr.bf16.mxu0 0
        %2155 = vmatpush1.bf16.msra.mxu0 0
        %2156 = vmatprep.subr.bf16.mxu0 0
        %2157 = vmatpush1.bf16.msra.mxu0 0
        %2158 = vmatprep.subr.bf16.mxu0 0
        %2159 = vmatpush1.bf16.msra.mxu0 0
        %2160 = vmatprep.subr.bf16.mxu0 0
        %2161 = vmatpush1.bf16.msra.mxu0 0
        %2162 = vmatprep.subr.bf16.mxu0 0
        %2163 = vmatpush1.bf16.msra.mxu0 0
        %2164 = vmatprep.subr.bf16.mxu0 0
        %2165 = vmatpush1.bf16.msra.mxu0 0
        %2166 = vmatprep.subr.bf16.mxu0 0
        %2167 = vmatpush1.bf16.msra.mxu0 0
        %2168 = vmatprep.subr.bf16.mxu0 0
        %2169 = vmatpush1.bf16.msra.mxu0 0
        %2170 = vmatprep.mubr.bf16.mxu0 0
        %2171 = vmatmul.mubr.bf16.gmra.mrb[0].mxu0 %v1402
        %v2172 = vpop.f32.mrb[0].mxu0
        %v2173 = vadd.f32 %v1980, %v2172
        %v2174 = vpop.f32.mrb[0].mxu0
        %v2175 = vadd.f32 %v1982, %v2174
        %v2176 = vpop.f32.mrb[0].mxu0
        %v2177 = vadd.f32 %v1984, %v2176
        %v2178 = vpop.f32.mrb[0].mxu0
        %v2179 = vadd.f32 %v1986, %v2178
        %2180 = vmatprep.mubr.bf16.mxu0 0
        %2181 = vmatmul.mubr.bf16.gmra.mrb[0].mxu0 %v1405
        %v2182 = vpop.f32.mrb[0].mxu0
        %v2183 = vadd.f32 %v1990, %v2182
        %v2184 = vpop.f32.mrb[0].mxu0
        %v2185 = vadd.f32 %v1992, %v2184
        %v2186 = vpop.f32.mrb[0].mxu0
        %v2187 = vadd.f32 %v1994, %v2186
        %v2188 = vpop.f32.mrb[0].mxu0
        %v2189 = vadd.f32 %v1996, %v2188
        %2190 = vmatprep.mubr.bf16.mxu0 0
        %2191 = vmatmul.mubr.bf16.gmra.mrb[0].mxu0 %v1408
        %v2192 = vpop.f32.mrb[0].mxu0
        %v2193 = vadd.f32 %v2000, %v2192
        %v2194 = vpop.f32.mrb[0].mxu0
        %v2195 = vadd.f32 %v2002, %v2194
        %v2196 = vpop.f32.mrb[0].mxu0
        %v2197 = vadd.f32 %v2004, %v2196
        %v2198 = vpop.f32.mrb[0].mxu0
        %v2199 = vadd.f32 %v2006, %v2198
        %2200 = vmatprep.mubr.bf16.mxu0 0
        %2201 = vmatmul.mubr.bf16.gmra.mrb[0].mxu0 %v1411
        %v2202 = vpop.f32.mrb[0].mxu0
        %v2203 = vadd.f32 %v2010, %v2202
        %v2204 = vpop.f32.mrb[0].mxu0
        %v2205 = vadd.f32 %v2012, %v2204
        %v2206 = vpop.f32.mrb[0].mxu0
        %v2207 = vadd.f32 %v2014, %v2206
        %v2208 = vpop.f32.mrb[0].mxu0
        %v2209 = vadd.f32 %v2016, %v2208
        %2210 = vmatprep.mubr.bf16.mxu0 0
        %2211 = vmatmul.mubr.bf16.gmra.mrb[0].mxu0 %v1414
        %v2212 = vpop.f32.mrb[0].mxu0
        %v2213 = vadd.f32 %v2020, %v2212
        %v2214 = vpop.f32.mrb[0].mxu0
        %v2215 = vadd.f32 %v2022, %v2214
        %v2216 = vpop.f32.mrb[0].mxu0
        %v2217 = vadd.f32 %v2024, %v2216
        %v2218 = vpop.f32.mrb[0].mxu0
        %v2219 = vadd.f32 %v2026, %v2218
        %2220 = vmatprep.mubr.bf16.mxu0 0
        %2221 = vmatmul.mubr.bf16.gmra.mrb[0].mxu0 %v1417
        %v2222 = vpop.f32.mrb[0].mxu0
        %v2223 = vadd.f32 %v2030, %v2222
        %v2224 = vpop.f32.mrb[0].mxu0
        %v2225 = vadd.f32 %v2032, %v2224
        %v2226 = vpop.f32.mrb[0].mxu0
        %v2227 = vadd.f32 %v2034, %v2226
        %v2228 = vpop.f32.mrb[0].mxu0
        %v2229 = vadd.f32 %v2036, %v2228
        %2230 = vmatprep.mubr.bf16.mxu0 0
        %2231 = vmatmul.mubr.bf16.gmra.mrb[0].mxu0 %v1420
        %v2232 = vpop.f32.mrb[0].mxu0
        %v2233 = vadd.f32 %v2040, %v2232
        %v2234 = vpop.f32.mrb[0].mxu0
        %v2235 = vadd.f32 %v2042, %v2234
        %v2236 = vpop.f32.mrb[0].mxu0
        %v2237 = vadd.f32 %v2044, %v2236
        %v2238 = vpop.f32.mrb[0].mxu0
        %v2239 = vadd.f32 %v2046, %v2238
        %2240 = vmatprep.mubr.bf16.mxu0 0
        %2241 = vmatmul.mubr.bf16.gmra.mrb[0].mxu0 %v1423
        %v2242 = vpop.f32.mrb[0].mxu0
        %v2243 = vadd.f32 %v2050, %v2242
        %v2244 = vpop.f32.mrb[0].mxu0
        %v2245 = vadd.f32 %v2052, %v2244
        %v2246 = vpop.f32.mrb[0].mxu0
        %v2247 = vadd.f32 %v2054, %v2246
        %v2248 = vpop.f32.mrb[0].mxu0
        %v2249 = vadd.f32 %v2056, %v2248
        %2250 = vmatprep.mubr.bf16.mxu0 0
        %2251 = vmatmul.mubr.bf16.gmra.mrb[0].mxu0 %v1426
        %v2252 = vpop.f32.mrb[0].mxu0
        %v2253 = vadd.f32 %v2060, %v2252
        %v2254 = vpop.f32.mrb[0].mxu0
        %v2255 = vadd.f32 %v2062, %v2254
        %v2256 = vpop.f32.mrb[0].mxu0
        %v2257 = vadd.f32 %v2064, %v2256
        %v2258 = vpop.f32.mrb[0].mxu0
        %v2259 = vadd.f32 %v2066, %v2258
        %2260 = vmatprep.mubr.bf16.mxu0 0
        %2261 = vmatmul.mubr.bf16.gmra.mrb[0].mxu0 %v1429
        %v2262 = vpop.f32.mrb[0].mxu0
        %v2263 = vadd.f32 %v2070, %v2262
        %v2264 = vpop.f32.mrb[0].mxu0
        %v2265 = vadd.f32 %v2072, %v2264
        %v2266 = vpop.f32.mrb[0].mxu0
        %v2267 = vadd.f32 %v2074, %v2266
        %v2268 = vpop.f32.mrb[0].mxu0
        %v2269 = vadd.f32 %v2076, %v2268
        %2270 = vmatprep.mubr.bf16.mxu0 0
        %2271 = vmatmul.mubr.bf16.gmra.mrb[0].mxu0 %v1432
        %v2272 = vpop.f32.mrb[0].mxu0
        %v2273 = vadd.f32 %v2080, %v2272
        %v2274 = vpop.f32.mrb[0].mxu0
        %v2275 = vadd.f32 %v2082, %v2274
        %v2276 = vpop.f32.mrb[0].mxu0
        %v2277 = vadd.f32 %v2084, %v2276
        %v2278 = vpop.f32.mrb[0].mxu0
        %v2279 = vadd.f32 %v2086, %v2278
        %2280 = vmatprep.mubr.bf16.mxu0 0
        %2281 = vmatmul.mubr.bf16.gmra.mrb[0].mxu0 %v1435
        %v2282 = vpop.f32.mrb[0].mxu0
        %v2283 = vadd.f32 %v2090, %v2282
        %v2284 = vpop.f32.mrb[0].mxu0
        %v2285 = vadd.f32 %v2092, %v2284
        %v2286 = vpop.f32.mrb[0].mxu0
        %v2287 = vadd.f32 %v2094, %v2286
        %v2288 = vpop.f32.mrb[0].mxu0
        %v2289 = vadd.f32 %v2096, %v2288
        %2290 = vmatprep.mubr.bf16.mxu0 0
        %2291 = vmatmul.mubr.bf16.gmra.mrb[0].mxu0 %v1438
        %v2292 = vpop.f32.mrb[0].mxu0
        %v2293 = vadd.f32 %v2100, %v2292
        %v2294 = vpop.f32.mrb[0].mxu0
        %v2295 = vadd.f32 %v2102, %v2294
        %v2296 = vpop.f32.mrb[0].mxu0
        %v2297 = vadd.f32 %v2104, %v2296
        %v2298 = vpop.f32.mrb[0].mxu0
        %v2299 = vadd.f32 %v2106, %v2298
        %2300 = vmatprep.mubr.bf16.mxu0 0
        %2301 = vmatmul.mubr.bf16.gmra.mrb[0].mxu0 %v1441
        %v2302 = vpop.f32.mrb[0].mxu0
        %v2303 = vadd.f32 %v2110, %v2302
        %v2304 = vpop.f32.mrb[0].mxu0
        %v2305 = vadd.f32 %v2112, %v2304
        %v2306 = vpop.f32.mrb[0].mxu0
        %v2307 = vadd.f32 %v2114, %v2306
        %v2308 = vpop.f32.mrb[0].mxu0
        %v2309 = vadd.f32 %v2116, %v2308
        %2310 = vmatprep.mubr.bf16.mxu0 0
        %2311 = vmatmul.mubr.bf16.gmra.mrb[0].mxu0 %v1444
        %v2312 = vpop.f32.mrb[0].mxu0
        %v2313 = vadd.f32 %v2120, %v2312
        %v2314 = vpop.f32.mrb[0].mxu0
        %v2315 = vadd.f32 %v2122, %v2314
        %v2316 = vpop.f32.mrb[0].mxu0
        %v2317 = vadd.f32 %v2124, %v2316
        %v2318 = vpop.f32.mrb[0].mxu0
        %v2319 = vadd.f32 %v2126, %v2318
        %2320 = vmatprep.mubr.bf16.mxu0 0
        %2321 = vmatmul.mubr.bf16.gmra.mrb[0].mxu0 %v1447
        %v2322 = vpop.f32.mrb[0].mxu0
        %v2323 = vadd.f32 %v2130, %v2322
        %v2324 = vpop.f32.mrb[0].mxu0
        %v2325 = vadd.f32 %v2132, %v2324
        %v2326 = vpop.f32.mrb[0].mxu0
        %v2327 = vadd.f32 %v2134, %v2326
        %v2328 = vpop.f32.mrb[0].mxu0
        %v2329 = vadd.f32 %v2136, %v2328
        %2330 = vdwg.mxu0
        %2331 = vmatprep.subr.bf16.mxu0 0
        %2332 = vmatpush1.bf16.msra.mxu0 %v1803
        %2333 = vmatprep.subr.bf16.mxu0 0
        %2334 = vmatpush1.bf16.msra.mxu0 %v1806
        %2335 = vmatprep.subr.bf16.mxu0 0
        %2336 = vmatpush1.bf16.msra.mxu0 %v1809
        %2337 = vmatprep.subr.bf16.mxu0 0
        %2338 = vmatpush1.bf16.msra.mxu0 %v1812
        %2339 = vmatprep.subr.bf16.mxu0 0
        %2340 = vmatpush1.bf16.msra.mxu0 %v1815
        %2341 = vmatprep.subr.bf16.mxu0 0
        %2342 = vmatpush1.bf16.msra.mxu0 %v1818
        %2343 = vmatprep.subr.bf16.mxu0 0
        %2344 = vmatpush1.bf16.msra.mxu0 %v1821
        %2345 = vmatprep.subr.bf16.mxu0 0
        %2346 = vmatpush1.bf16.msra.mxu0 %v1824
        %2347 = vmatprep.subr.bf16.mxu0 0
        %2348 = vmatpush1.bf16.msra.mxu0 %v1827
        %2349 = vmatprep.subr.bf16.mxu0 0
        %2350 = vmatpush1.bf16.msra.mxu0 %v1830
        %2351 = vmatprep.subr.bf16.mxu0 0
        %2352 = vmatpush1.bf16.msra.mxu0 %v1833
        %2353 = vmatprep.subr.bf16.mxu0 0
        %2354 = vmatpush1.bf16.msra.mxu0 %v1836
        %2355 = vmatprep.subr.bf16.mxu0 0
        %2356 = vmatpush1.bf16.msra.mxu0 %v1839
        %2357 = vmatprep.subr.bf16.mxu0 0
        %2358 = vmatpush1.bf16.msra.mxu0 %v1842
        %2359 = vmatprep.subr.bf16.mxu0 0
        %2360 = vmatpush1.bf16.msra.mxu0 %v1845
        %2361 = vmatprep.subr.bf16.mxu0 0
        %2362 = vmatpush1.bf16.msra.mxu0 %v1848
        %2363 = vmatprep.mubr.bf16.mxu0 %v1401
        %2364 = vmatmul.mubr.bf16.gmra.mrb[0].mxu0 %v1400
        %v2365 = vpop.f32.mrb[0].mxu0
        %v2366 = vadd.f32 %v1557, %v2365
        %v2367 = vpop.f32.mrb[0].mxu0
        %v2368 = vpop.f32.mrb[0].mxu0
        %v2369 = vadd.f32 %v1557, %v2368
        %v2370 = vpop.f32.mrb[0].mxu0
        %2371 = vmatprep.mubr.bf16.mxu0 %v1404
        %2372 = vmatmul.mubr.bf16.gmra.mrb[0].mxu0 %v1403
        %v2373 = vpop.f32.mrb[0].mxu0
        %v2374 = vadd.f32 %v1557, %v2373
        %v2375 = vpop.f32.mrb[0].mxu0
        %v2376 = vpop.f32.mrb[0].mxu0
        %v2377 = vadd.f32 %v1557, %v2376
        %v2378 = vpop.f32.mrb[0].mxu0
        %2379 = vmatprep.mubr.bf16.mxu0 %v1407
        %2380 = vmatmul.mubr.bf16.gmra.mrb[0].mxu0 %v1406
        %v2381 = vpop.f32.mrb[0].mxu0
        %v2382 = vadd.f32 %v1557, %v2381
        %v2383 = vpop.f32.mrb[0].mxu0
        %v2384 = vpop.f32.mrb[0].mxu0
        %v2385 = vadd.f32 %v1557, %v2384
        %v2386 = vpop.f32.mrb[0].mxu0
        %2387 = vmatprep.mubr.bf16.mxu0 %v1410
        %2388 = vmatmul.mubr.bf16.gmra.mrb[0].mxu0 %v1409
        %v2389 = vpop.f32.mrb[0].mxu0
        %v2390 = vadd.f32 %v1557, %v2389
        %v2391 = vpop.f32.mrb[0].mxu0
        %v2392 = vpop.f32.mrb[0].mxu0
        %v2393 = vadd.f32 %v1557, %v2392
        %v2394 = vpop.f32.mrb[0].mxu0
        %2395 = vmatprep.mubr.bf16.mxu0 %v1413
        %2396 = vmatmul.mubr.bf16.gmra.mrb[0].mxu0 %v1412
        %v2397 = vpop.f32.mrb[0].mxu0
        %v2398 = vadd.f32 %v1557, %v2397
        %v2399 = vpop.f32.mrb[0].mxu0
        %v2400 = vpop.f32.mrb[0].mxu0
        %v2401 = vadd.f32 %v1557, %v2400
        %v2402 = vpop.f32.mrb[0].mxu0
        %2403 = vmatprep.mubr.bf16.mxu0 %v1416
        %2404 = vmatmul.mubr.bf16.gmra.mrb[0].mxu0 %v1415
        %v2405 = vpop.f32.mrb[0].mxu0
        %v2406 = vadd.f32 %v1557, %v2405
        %v2407 = vpop.f32.mrb[0].mxu0
        %v2408 = vpop.f32.mrb[0].mxu0
        %v2409 = vadd.f32 %v1557, %v2408
        %v2410 = vpop.f32.mrb[0].mxu0
        %2411 = vmatprep.mubr.bf16.mxu0 %v1419
        %2412 = vmatmul.mubr.bf16.gmra.mrb[0].mxu0 %v1418
        %v2413 = vpop.f32.mrb[0].mxu0
        %v2414 = vadd.f32 %v1557, %v2413
        %v2415 = vpop.f32.mrb[0].mxu0
        %v2416 = vpop.f32.mrb[0].mxu0
        %v2417 = vadd.f32 %v1557, %v2416
        %v2418 = vpop.f32.mrb[0].mxu0
        %2419 = vmatprep.mubr.bf16.mxu0 %v1422
        %2420 = vmatmul.mubr.bf16.gmra.mrb[0].mxu0 %v1421
        %v2421 = vpop.f32.mrb[0].mxu0
        %v2422 = vadd.f32 %v1557, %v2421
        %v2423 = vpop.f32.mrb[0].mxu0
        %v2424 = vpop.f32.mrb[0].mxu0
        %v2425 = vadd.f32 %v1557, %v2424
        %v2426 = vpop.f32.mrb[0].mxu0
        %2427 = vmatprep.mubr.bf16.mxu0 %v1425
        %2428 = vmatmul.mubr.bf16.gmra.mrb[0].mxu0 %v1424
        %v2429 = vpop.f32.mrb[0].mxu0
        %v2430 = vadd.f32 %v1557, %v2429
        %v2431 = vpop.f32.mrb[0].mxu0
        %v2432 = vpop.f32.mrb[0].mxu0
        %v2433 = vadd.f32 %v1557, %v2432
        %v2434 = vpop.f32.mrb[0].mxu0
        %2435 = vmatprep.mubr.bf16.mxu0 %v1428
        %2436 = vmatmul.mubr.bf16.gmra.mrb[0].mxu0 %v1427
        %v2437 = vpop.f32.mrb[0].mxu0
        %v2438 = vadd.f32 %v1557, %v2437
        %v2439 = vpop.f32.mrb[0].mxu0
        %v2440 = vpop.f32.mrb[0].mxu0
        %v2441 = vadd.f32 %v1557, %v2440
        %v2442 = vpop.f32.mrb[0].mxu0
        %2443 = vmatprep.mubr.bf16.mxu0 %v1431
        %2444 = vmatmul.mubr.bf16.gmra.mrb[0].mxu0 %v1430
        %v2445 = vpop.f32.mrb[0].mxu0
        %v2446 = vadd.f32 %v1557, %v2445
        %v2447 = vpop.f32.mrb[0].mxu0
        %v2448 = vpop.f32.mrb[0].mxu0
        %v2449 = vadd.f32 %v1557, %v2448
        %v2450 = vpop.f32.mrb[0].mxu0
        %2451 = vmatprep.mubr.bf16.mxu0 %v1434
        %2452 = vmatmul.mubr.bf16.gmra.mrb[0].mxu0 %v1433
        %v2453 = vpop.f32.mrb[0].mxu0
        %v2454 = vadd.f32 %v1557, %v2453
        %v2455 = vpop.f32.mrb[0].mxu0
        %v2456 = vpop.f32.mrb[0].mxu0
        %v2457 = vadd.f32 %v1557, %v2456
        %v2458 = vpop.f32.mrb[0].mxu0
        %2459 = vmatprep.mubr.bf16.mxu0 %v1437
        %2460 = vmatmul.mubr.bf16.gmra.mrb[0].mxu0 %v1436
        %v2461 = vpop.f32.mrb[0].mxu0
        %v2462 = vadd.f32 %v1557, %v2461
        %v2463 = vpop.f32.mrb[0].mxu0
        %v2464 = vpop.f32.mrb[0].mxu0
        %v2465 = vadd.f32 %v1557, %v2464
        %v2466 = vpop.f32.mrb[0].mxu0
        %2467 = vmatprep.mubr.bf16.mxu0 %v1440
        %2468 = vmatmul.mubr.bf16.gmra.mrb[0].mxu0 %v1439
        %v2469 = vpop.f32.mrb[0].mxu0
        %v2470 = vadd.f32 %v1557, %v2469
        %v2471 = vpop.f32.mrb[0].mxu0
        %v2472 = vpop.f32.mrb[0].mxu0
        %v2473 = vadd.f32 %v1557, %v2472
        %v2474 = vpop.f32.mrb[0].mxu0
        %2475 = vmatprep.mubr.bf16.mxu0 %v1443
        %2476 = vmatmul.mubr.bf16.gmra.mrb[0].mxu0 %v1442
        %v2477 = vpop.f32.mrb[0].mxu0
        %v2478 = vadd.f32 %v1557, %v2477
        %v2479 = vpop.f32.mrb[0].mxu0
        %v2480 = vpop.f32.mrb[0].mxu0
        %v2481 = vadd.f32 %v1557, %v2480
        %v2482 = vpop.f32.mrb[0].mxu0
        %2483 = vmatprep.mubr.bf16.mxu0 %v1446
        %2484 = vmatmul.mubr.bf16.gmra.mrb[0].mxu0 %v1445
        %v2485 = vpop.f32.mrb[0].mxu0
        %v2486 = vadd.f32 %v1557, %v2485
        %v2487 = vpop.f32.mrb[0].mxu0
        %v2488 = vpop.f32.mrb[0].mxu0
        %v2489 = vadd.f32 %v1557, %v2488
        %v2490 = vpop.f32.mrb[0].mxu0
        %2491 = vdwg.mxu0
        %2492 = vmatprep.subr.bf16.mxu0 0
        %2493 = vmatpush1.bf16.msra.mxu0 %v1851
        %2494 = vmatprep.subr.bf16.mxu0 0
        %2495 = vmatpush1.bf16.msra.mxu0 %v1854
        %2496 = vmatprep.subr.bf16.mxu0 0
        %2497 = vmatpush1.bf16.msra.mxu0 %v1857
        %2498 = vmatprep.subr.bf16.mxu0 0
        %2499 = vmatpush1.bf16.msra.mxu0 %v1860
        %2500 = vmatprep.subr.bf16.mxu0 0
        %2501 = vmatpush1.bf16.msra.mxu0 %v1863
        %2502 = vmatprep.subr.bf16.mxu0 0
        %2503 = vmatpush1.bf16.msra.mxu0 %v1866
        %2504 = vmatprep.subr.bf16.mxu0 0
        %2505 = vmatpush1.bf16.msra.mxu0 %v1869
        %2506 = vmatprep.subr.bf16.mxu0 0
        %2507 = vmatpush1.bf16.msra.mxu0 %v1872
        %2508 = vmatprep.subr.bf16.mxu0 0
        %2509 = vmatpush1.bf16.msra.mxu0 0
        %2510 = vmatprep.subr.bf16.mxu0 0
        %2511 = vmatpush1.bf16.msra.mxu0 0
        %2512 = vmatprep.subr.bf16.mxu0 0
        %2513 = vmatpush1.bf16.msra.mxu0 0
        %2514 = vmatprep.subr.bf16.mxu0 0
        %2515 = vmatpush1.bf16.msra.mxu0 0
        %2516 = vmatprep.subr.bf16.mxu0 0
        %2517 = vmatpush1.bf16.msra.mxu0 0
        %2518 = vmatprep.subr.bf16.mxu0 0
        %2519 = vmatpush1.bf16.msra.mxu0 0
        %2520 = vmatprep.subr.bf16.mxu0 0
        %2521 = vmatpush1.bf16.msra.mxu0 0
        %2522 = vmatprep.subr.bf16.mxu0 0
        %2523 = vmatpush1.bf16.msra.mxu0 0
        %2524 = vmatprep.mubr.bf16.mxu0 0
        %2525 = vmatmul.mubr.bf16.gmra.mrb[0].mxu0 %v1402
        %v2526 = vpop.f32.mrb[0].mxu0
        %v2527 = vadd.f32 %v2366, %v2526
        %v2528 = vpop.f32.mrb[0].mxu0
        %v2529 = vpop.f32.mrb[0].mxu0
        %v2530 = vadd.f32 %v2369, %v2529
        %v2531 = vpop.f32.mrb[0].mxu0
        %2532 = vmatprep.mubr.bf16.mxu0 0
        %2533 = vmatmul.mubr.bf16.gmra.mrb[0].mxu0 %v1405
        %v2534 = vpop.f32.mrb[0].mxu0
        %v2535 = vadd.f32 %v2374, %v2534
        %v2536 = vpop.f32.mrb[0].mxu0
        %v2537 = vpop.f32.mrb[0].mxu0
        %v2538 = vadd.f32 %v2377, %v2537
        %v2539 = vpop.f32.mrb[0].mxu0
        %2540 = vmatprep.mubr.bf16.mxu0 0
        %2541 = vmatmul.mubr.bf16.gmra.mrb[0].mxu0 %v1408
        %v2542 = vpop.f32.mrb[0].mxu0
        %v2543 = vadd.f32 %v2382, %v2542
        %v2544 = vpop.f32.mrb[0].mxu0
        %v2545 = vpop.f32.mrb[0].mxu0
        %v2546 = vadd.f32 %v2385, %v2545
        %v2547 = vpop.f32.mrb[0].mxu0
        %2548 = vmatprep.mubr.bf16.mxu0 0
        %2549 = vmatmul.mubr.bf16.gmra.mrb[0].mxu0 %v1411
        %v2550 = vpop.f32.mrb[0].mxu0
        %v2551 = vadd.f32 %v2390, %v2550
        %v2552 = vpop.f32.mrb[0].mxu0
        %v2553 = vpop.f32.mrb[0].mxu0
        %v2554 = vadd.f32 %v2393, %v2553
        %v2555 = vpop.f32.mrb[0].mxu0
        %2556 = vmatprep.mubr.bf16.mxu0 0
        %2557 = vmatmul.mubr.bf16.gmra.mrb[0].mxu0 %v1414
        %v2558 = vpop.f32.mrb[0].mxu0
        %v2559 = vadd.f32 %v2398, %v2558
        %v2560 = vpop.f32.mrb[0].mxu0
        %v2561 = vpop.f32.mrb[0].mxu0
        %v2562 = vadd.f32 %v2401, %v2561
        %v2563 = vpop.f32.mrb[0].mxu0
        %2564 = vmatprep.mubr.bf16.mxu0 0
        %2565 = vmatmul.mubr.bf16.gmra.mrb[0].mxu0 %v1417
        %v2566 = vpop.f32.mrb[0].mxu0
        %v2567 = vadd.f32 %v2406, %v2566
        %v2568 = vpop.f32.mrb[0].mxu0
        %v2569 = vpop.f32.mrb[0].mxu0
        %v2570 = vadd.f32 %v2409, %v2569
        %v2571 = vpop.f32.mrb[0].mxu0
        %2572 = vmatprep.mubr.bf16.mxu0 0
        %2573 = vmatmul.mubr.bf16.gmra.mrb[0].mxu0 %v1420
        %v2574 = vpop.f32.mrb[0].mxu0
        %v2575 = vadd.f32 %v2414, %v2574
        %v2576 = vpop.f32.mrb[0].mxu0
        %v2577 = vpop.f32.mrb[0].mxu0
        %v2578 = vadd.f32 %v2417, %v2577
        %v2579 = vpop.f32.mrb[0].mxu0
        %2580 = vmatprep.mubr.bf16.mxu0 0
        %2581 = vmatmul.mubr.bf16.gmra.mrb[0].mxu0 %v1423
        %v2582 = vpop.f32.mrb[0].mxu0
        %v2583 = vadd.f32 %v2422, %v2582
        %v2584 = vpop.f32.mrb[0].mxu0
        %v2585 = vpop.f32.mrb[0].mxu0
        %v2586 = vadd.f32 %v2425, %v2585
        %v2587 = vpop.f32.mrb[0].mxu0
        %2588 = vmatprep.mubr.bf16.mxu0 0
        %2589 = vmatmul.mubr.bf16.gmra.mrb[0].mxu0 %v1426
        %v2590 = vpop.f32.mrb[0].mxu0
        %v2591 = vadd.f32 %v2430, %v2590
        %v2592 = vpop.f32.mrb[0].mxu0
        %v2593 = vpop.f32.mrb[0].mxu0
        %v2594 = vadd.f32 %v2433, %v2593
        %v2595 = vpop.f32.mrb[0].mxu0
        %2596 = vmatprep.mubr.bf16.mxu0 0
        %2597 = vmatmul.mubr.bf16.gmra.mrb[0].mxu0 %v1429
        %v2598 = vpop.f32.mrb[0].mxu0
        %v2599 = vadd.f32 %v2438, %v2598
        %v2600 = vpop.f32.mrb[0].mxu0
        %v2601 = vpop.f32.mrb[0].mxu0
        %v2602 = vadd.f32 %v2441, %v2601
        %v2603 = vpop.f32.mrb[0].mxu0
        %2604 = vmatprep.mubr.bf16.mxu0 0
        %2605 = vmatmul.mubr.bf16.gmra.mrb[0].mxu0 %v1432
        %v2606 = vpop.f32.mrb[0].mxu0
        %v2607 = vadd.f32 %v2446, %v2606
        %v2608 = vpop.f32.mrb[0].mxu0
        %v2609 = vpop.f32.mrb[0].mxu0
        %v2610 = vadd.f32 %v2449, %v2609
        %v2611 = vpop.f32.mrb[0].mxu0
        %2612 = vmatprep.mubr.bf16.mxu0 0
        %2613 = vmatmul.mubr.bf16.gmra.mrb[0].mxu0 %v1435
        %v2614 = vpop.f32.mrb[0].mxu0
        %v2615 = vadd.f32 %v2454, %v2614
        %v2616 = vpop.f32.mrb[0].mxu0
        %v2617 = vpop.f32.mrb[0].mxu0
        %v2618 = vadd.f32 %v2457, %v2617
        %v2619 = vpop.f32.mrb[0].mxu0
        %2620 = vmatprep.mubr.bf16.mxu0 0
        %2621 = vmatmul.mubr.bf16.gmra.mrb[0].mxu0 %v1438
        %v2622 = vpop.f32.mrb[0].mxu0
        %v2623 = vadd.f32 %v2462, %v2622
        %v2624 = vpop.f32.mrb[0].mxu0
        %v2625 = vpop.f32.mrb[0].mxu0
        %v2626 = vadd.f32 %v2465, %v2625
        %v2627 = vpop.f32.mrb[0].mxu0
        %2628 = vmatprep.mubr.bf16.mxu0 0
        %2629 = vmatmul.mubr.bf16.gmra.mrb[0].mxu0 %v1441
        %v2630 = vpop.f32.mrb[0].mxu0
        %v2631 = vadd.f32 %v2470, %v2630
        %v2632 = vpop.f32.mrb[0].mxu0
        %v2633 = vpop.f32.mrb[0].mxu0
        %v2634 = vadd.f32 %v2473, %v2633
        %v2635 = vpop.f32.mrb[0].mxu0
        %2636 = vmatprep.mubr.bf16.mxu0 0
        %2637 = vmatmul.mubr.bf16.gmra.mrb[0].mxu0 %v1444
        %v2638 = vpop.f32.mrb[0].mxu0
        %v2639 = vadd.f32 %v2478, %v2638
        %v2640 = vpop.f32.mrb[0].mxu0
        %v2641 = vpop.f32.mrb[0].mxu0
        %v2642 = vadd.f32 %v2481, %v2641
        %v2643 = vpop.f32.mrb[0].mxu0
        %2644 = vmatprep.mubr.bf16.mxu0 0
        %2645 = vmatmul.mubr.bf16.gmra.mrb[0].mxu0 %v1447
        %v2646 = vpop.f32.mrb[0].mxu0
        %v2647 = vadd.f32 %v2486, %v2646
        %v2648 = vpop.f32.mrb[0].mxu0
        %v2649 = vpop.f32.mrb[0].mxu0
        %v2650 = vadd.f32 %v2489, %v2649
        %v2651 = vpop.f32.mrb[0].mxu0
        %2652 = vdwg.mxu0
        %2653 = vst [vmem:[%s294] sm:$0xff] %v2173
        %2654 = vst [vmem:[%s294 + $0x8] sm:$0xff] %v2175
        %2655 = vst [vmem:[%s294 + $0x10] sm:$0xff] %v2527
        %2656 = vst [vmem:[%s294 + $0x18] sm:$0xff] %v2177
        %2657 = vst [vmem:[%s294 + $0x20] sm:$0xff] %v2179
        %2658 = vst [vmem:[%s294 + $0x28] sm:$0xff] %v2530
        %2659 = vst [vmem:[%s294 + $0x30] sm:$0xff] %v2183
        %2660 = vst [vmem:[%s294 + $0x38] sm:$0xff] %v2185
        %2661 = vst [vmem:[%s294 + $0x40] sm:$0xff] %v2535
        %2662 = vst [vmem:[%s294 + $0x48] sm:$0xff] %v2187
        %2663 = vst [vmem:[%s294 + $0x50] sm:$0xff] %v2189
        %2664 = vst [vmem:[%s294 + $0x58] sm:$0xff] %v2538
        %2665 = vst [vmem:[%s294 + $0x60] sm:$0xff] %v2193
        %2666 = vst [vmem:[%s294 + $0x68] sm:$0xff] %v2195
        %2667 = vst [vmem:[%s294 + $0x70] sm:$0xff] %v2543
        %2668 = vst [vmem:[%s294 + $0x78] sm:$0xff] %v2197
        %2669 = vst [vmem:[%s294 + $0x80] sm:$0xff] %v2199
        %2670 = vst [vmem:[%s294 + $0x88] sm:$0xff] %v2546
        %2671 = vst [vmem:[%s294 + $0x90] sm:$0xff] %v2203
        %2672 = vst [vmem:[%s294 + $0x98] sm:$0xff] %v2205
        %2673 = vst [vmem:[%s294 + $0xa0] sm:$0xff] %v2551
        %2674 = vst [vmem:[%s294 + $0xa8] sm:$0xff] %v2207
        %2675 = vst [vmem:[%s294 + $0xb0] sm:$0xff] %v2209
        %2676 = vst [vmem:[%s294 + $0xb8] sm:$0xff] %v2554
        %2677 = vst [vmem:[%s294 + $0xc0] sm:$0xff] %v2213
        %2678 = vst [vmem:[%s294 + $0xc8] sm:$0xff] %v2215
        %2679 = vst [vmem:[%s294 + $0xd0] sm:$0xff] %v2559
        %2680 = vst [vmem:[%s294 + $0xd8] sm:$0xff] %v2217
        %2681 = vst [vmem:[%s294 + $0xe0] sm:$0xff] %v2219
        %2682 = vst [vmem:[%s294 + $0xe8] sm:$0xff] %v2562
        %2683 = vst [vmem:[%s294 + $0xf0] sm:$0xff] %v2223
        %2684 = vst [vmem:[%s294 + $0xf8] sm:$0xff] %v2225
        %2685 = vst [vmem:[%s294 + $0x100] sm:$0xff] %v2567
        %2686 = vst [vmem:[%s294 + $0x108] sm:$0xff] %v2227
        %2687 = vst [vmem:[%s294 + $0x110] sm:$0xff] %v2229
        %2688 = vst [vmem:[%s294 + $0x118] sm:$0xff] %v2570
        %2689 = vst [vmem:[%s294 + $0x120] sm:$0xff] %v2233
        %2690 = vst [vmem:[%s294 + $0x128] sm:$0xff] %v2235
        %2691 = vst [vmem:[%s294 + $0x130] sm:$0xff] %v2575
        %2692 = vst [vmem:[%s294 + $0x138] sm:$0xff] %v2237
        %2693 = vst [vmem:[%s294 + $0x140] sm:$0xff] %v2239
        %2694 = vst [vmem:[%s294 + $0x148] sm:$0xff] %v2578
        %2695 = vst [vmem:[%s294 + $0x150] sm:$0xff] %v2243
        %2696 = vst [vmem:[%s294 + $0x158] sm:$0xff] %v2245
        %2697 = vst [vmem:[%s294 + $0x160] sm:$0xff] %v2583
        %2698 = vst [vmem:[%s294 + $0x168] sm:$0xff] %v2247
        %2699 = vst [vmem:[%s294 + $0x170] sm:$0xff] %v2249
        %2700 = vst [vmem:[%s294 + $0x178] sm:$0xff] %v2586
        %2701 = vst [vmem:[%s294 + $0x180] sm:$0xff] %v2253
        %2702 = vst [vmem:[%s294 + $0x188] sm:$0xff] %v2255
        %2703 = vst [vmem:[%s294 + $0x190] sm:$0xff] %v2591
        %2704 = vst [vmem:[%s294 + $0x198] sm:$0xff] %v2257
        %2705 = vst [vmem:[%s294 + $0x1a0] sm:$0xff] %v2259
        %2706 = vst [vmem:[%s294 + $0x1a8] sm:$0xff] %v2594
        %2707 = vst [vmem:[%s294 + $0x1b0] sm:$0xff] %v2263
        %2708 = vst [vmem:[%s294 + $0x1b8] sm:$0xff] %v2265
        %2709 = vst [vmem:[%s294 + $0x1c0] sm:$0xff] %v2599
        %2710 = vst [vmem:[%s294 + $0x1c8] sm:$0xff] %v2267
        %2711 = vst [vmem:[%s294 + $0x1d0] sm:$0xff] %v2269
        %2712 = vst [vmem:[%s294 + $0x1d8] sm:$0xff] %v2602
        %2713 = vst [vmem:[%s294 + $0x1e0] sm:$0xff] %v2273
        %2714 = vst [vmem:[%s294 + $0x1e8] sm:$0xff] %v2275
        %2715 = vst [vmem:[%s294 + $0x1f0] sm:$0xff] %v2607
        %2716 = vst [vmem:[%s294 + $0x1f8] sm:$0xff] %v2277
        %2717 = vst [vmem:[%s294 + $0x200] sm:$0xff] %v2279
        %2718 = vst [vmem:[%s294 + $0x208] sm:$0xff] %v2610
        %2719 = vst [vmem:[%s294 + $0x210] sm:$0xff] %v2283
        %2720 = vst [vmem:[%s294 + $0x218] sm:$0xff] %v2285
        %2721 = vst [vmem:[%s294 + $0x220] sm:$0xff] %v2615
        %2722 = vst [vmem:[%s294 + $0x228] sm:$0xff] %v2287
        %2723 = vst [vmem:[%s294 + $0x230] sm:$0xff] %v2289
        %2724 = vst [vmem:[%s294 + $0x238] sm:$0xff] %v2618
        %2725 = vst [vmem:[%s294 + $0x240] sm:$0xff] %v2293
        %2726 = vst [vmem:[%s294 + $0x248] sm:$0xff] %v2295
        %2727 = vst [vmem:[%s294 + $0x250] sm:$0xff] %v2623
        %2728 = vst [vmem:[%s294 + $0x258] sm:$0xff] %v2297
        %2729 = vst [vmem:[%s294 + $0x260] sm:$0xff] %v2299
        %2730 = vst [vmem:[%s294 + $0x268] sm:$0xff] %v2626
        %2731 = vst [vmem:[%s294 + $0x270] sm:$0xff] %v2303
        %2732 = vst [vmem:[%s294 + $0x278] sm:$0xff] %v2305
        %2733 = vst [vmem:[%s294 + $0x280] sm:$0xff] %v2631
        %2734 = vst [vmem:[%s294 + $0x288] sm:$0xff] %v2307
        %2735 = vst [vmem:[%s294 + $0x290] sm:$0xff] %v2309
        %2736 = vst [vmem:[%s294 + $0x298] sm:$0xff] %v2634
        %2737 = vst [vmem:[%s294 + $0x2a0] sm:$0xff] %v2313
        %2738 = vst [vmem:[%s294 + $0x2a8] sm:$0xff] %v2315
        %2739 = vst [vmem:[%s294 + $0x2b0] sm:$0xff] %v2639
        %2740 = vst [vmem:[%s294 + $0x2b8] sm:$0xff] %v2317
        %2741 = vst [vmem:[%s294 + $0x2c0] sm:$0xff] %v2319
        %2742 = vst [vmem:[%s294 + $0x2c8] sm:$0xff] %v2642
        %2743 = vst [vmem:[%s294 + $0x2d0] sm:$0xff] %v2323
        %2744 = vst [vmem:[%s294 + $0x2d8] sm:$0xff] %v2325
        %2745 = vst [vmem:[%s294 + $0x2e0] sm:$0xff] %v2647
        %2746 = vst [vmem:[%s294 + $0x2e8] sm:$0xff] %v2327
        %2747 = vst [vmem:[%s294 + $0x2f0] sm:$0xff] %v2329
        %2748 = vst [vmem:[%s294 + $0x2f8] sm:$0xff] %v2650
        %s2749 = sand.u32 %s165, 1
        %s2750 = scalar_lea.sflag [#allocation5], %s2749
        %s2751 = sand.u32 %s165, 1
        %s2752 = smul.addr %s2751, 768
        %s2753 = scalar_lea.vmem [#allocation8], %s2752
        // Predicated region
        $region53: #{tpu_custom_call.1} parent=39 // pred_check
          %p2754 = pneg %p175
        $region54: #{tpu_custom_call.1} parent=39 // pred_check_branch
          %2756 = sbr.rel (%p2754) target = $region56
        $region55: #{tpu_custom_call.1} parent=39 // pred_region
          %s2757 = smul.u32 32, %s27
          %s2758 = smul.u32 3, %s28
          %s2760 = ssub.s32 12288, 12288
          %2761 = vsyncadd %s2750, %s2760
          %s2762 = smul.addr %s2757, 3
          %s2763 = sadd.s32 %s2758, %s2762
          %s2764 = smul.addr %s2763, 128
          %s2765 = scalar_lea.hbm %s5, %s2764
          %s2766 = sshll.u32 %s2753, 4
          %s2767 = int_to_ptr.vmem [resolvable:$true] %s2766
          %2772 = dma.vmem_to_hbm [thread:$0]  %s2767, 12288, %s2765, %s2750, 384, 384, 24
        $region56: #{tpu_custom_call.1} parent=39 // pred_fallthru
          _
      $region40: #{tpu_custom_call.1} parent=5 // pred_fallthru
        _
      %p2773 = scmp.le.s32.totalorder 2, %s18
      // Predicated region
      $region57: #{tpu_custom_call.1} parent=5 // pred_check
        %p2774 = pneg %p2773
      $region58: #{tpu_custom_call.1} parent=5 // pred_check_branch
        %2776 = sbr.rel (%p2774) target = $region60
      $region59: #{tpu_custom_call.1} parent=5 // pred_region
        %s2777 = ssub.s32 %s18, 2
        // Predicated region
        $region61: #{tpu_custom_call.1} parent=59 // pred_check
          %p2778 = pneg %p181
        $region62: #{tpu_custom_call.1} parent=59 // pred_check_branch
          %2780 = sbr.rel (%p2778) target = $region64
        $region63: #{tpu_custom_call.1} parent=59 // pred_region
          %s2781 = sand.u32 %s166, 1
          %s2782 = scalar_lea.sflag [#allocation5], %s2781
          %s2783 = sand.u32 %s166, 1
          %s2784 = smul.addr %s2783, 768
          %s2785 = scalar_lea.vmem [#allocation8], %s2784
          %2786 = dma.done %s2782, 12288
        $region64: #{tpu_custom_call.1} parent=59 // pred_fallthru
          _
      $region60: #{tpu_custom_call.1} parent=5 // pred_fallthru
        _
    $region6: #{tpu_custom_call.1} parent=1 // loop_footer
      %s22 = sadd.s32 1, %s18
    $region7: #{tpu_custom_call.1} parent=1 // loop_footer_branch
      %17 = sbr.rel target = $region3
    $region8: #{tpu_custom_call.1} parent=1 // loop_exit
      _
    %2787 = vsyncpa [#allocation4], 1
    %s2788 = scalar_lea.sflag [#allocation4], 1
    %2789 = vsyncpa %s2788, 1
    %2790 = vsyncpa [#allocation7], 1
    %2791 = vsyncpa [#allocation5], 1
    %s2792 = scalar_lea.sflag [#allocation5], 1
    %2793 = vsyncpa %s2792, 1

</llo_original>
